<compile_context>
chip_gen: v7x
topology: tpu7x:2x2x1
jax: 0.10.0
libtpu: 0.0.40
codegen_flags: <defaults>
</compile_context>

<pallas_src>
import jax
import jax.numpy as jnp
from jax import lax
from jax.experimental import pallas as pl
from jax.experimental.pallas import tpu as pltpu

# ----------------------------- config (small synthetic sizes) -----------------------------
NUM_WORDS   = 50
WORD_DIM    = 32     # conf.word_dim
NUM_FILTERS = 32     # conf.num_filters
KERNEL_SIZE = 3      # conf.kernel_size (padding=1 => output length == doc_size)
DOC_SIZE    = 16     # conf.doc_size
GRU_UNIT    = 32     # conf.gru_unit
HIS_SIZE    = 8      # conf.his_size
NUM_USERS   = 10
BATCH       = 2

# TODO(synk): F.dropout(training=True) is stochastic in the reference; implemented as identity here.


# ----------------------------- fused Pallas kernel -----------------------------
def lstur_user_kernel(xcol_ref, mask_ref, wconv_ref, bconv_ref, watt_ref, batt_ref,
                      h0_ref, wih_ref, whh_ref, bih_ref, bhh_ref, out_ref):
    """Single-step fused news-encoder + GRU user encoder.

    xcol_ref : (N*L, K*D)  im2col of zero-padded embedded titles
    mask_ref : (N, L)      float mask (token > 0)
    wconv_ref: (K*D, F)    conv weights, wconv[k*D+d, f] == torch_W[f, d, k]
    bconv_ref: (1, F)
    watt_ref : (1, F)      attention linear weight (output dim 1)
    batt_ref : (1, 1)
    h0_ref   : (B, H)      initial hidden (user embedding + bias)
    wih_ref  : (F, 3H)     packed [r|z|n] input weights
    whh_ref  : (H, 3H)     packed [r|z|n] hidden weights
    bih_ref  : (1, 3H)
    bhh_ref  : (1, 3H)
    out_ref  : (B, H)      user_present = GRU outputs[-1]
    """
    N, L = mask_ref.shape
    F = wconv_ref.shape[1]
    B, H = out_ref.shape
    T = N // B

    # ---- news encoder: conv as one big matmul (M=256, K=96, N=32) ----
    y = jnp.dot(xcol_ref[...], wconv_ref[...], preferred_element_type=jnp.float32)
    y = y + bconv_ref[...]                                     # (N*L, F)
    y3 = y.reshape(N, L, F)

    # ---- attention: a = exp(tanh(linear_1(y))) * mask ; alpha = a / (sum + 1e-6) ----
    a = jnp.tanh(jnp.sum(y3 * watt_ref[...], axis=-1) + batt_ref[0, 0])   # (N, L)
    a = jnp.exp(a) * mask_ref[...]                                        # (N, L)
    denom = jnp.sum(a, axis=1, keepdims=True) + 1e-6
    alpha = a / denom                                                     # (N, L)
    e_t = jnp.sum(alpha[:, :, None] * y3, axis=1)                         # (N, F)

    # ---- GRU: hoist input projection for all timesteps out of the recurrence ----
    gates_x = jnp.dot(e_t, wih_ref[...], preferred_element_type=jnp.float32) + bih_ref[...]  # (N, 3H)
    whh = whh_ref[...]
    bhh = bhh_ref[...]

    h = h0_ref[...]                                                       # (B, H)
    for t in range(T):                                                    # fully unrolled, static slices
        gx = gates_x[t * B:(t + 1) * B, :]                                # (B, 3H)
        gh = jnp.dot(h, whh, preferred_element_type=jnp.float32) + bhh    # (B, 3H)
        r = jax.nn.sigmoid(gx[:, :H] + gh[:, :H])
        z = jax.nn.sigmoid(gx[:, H:2 * H] + gh[:, H:2 * H])
        n = jnp.tanh(gx[:, 2 * H:] + r * gh[:, 2 * H:])
        h = (1.0 - z) * n + z * h

    out_ref[...] = h.astype(out_ref.dtype)


# ----------------------------- wrapper -----------------------------
@jax.jit
def user_encoder_forward(user_indexes, his_input_title, params):
    """type='ini' path of user_encoder.forward."""
    N, L = his_input_title.shape
    D = params["word_emb"].shape[1]
    F = NUM_FILTERS
    K = KERNEL_SIZE

    # glue: embedding gather + im2col (kernel only sees lane/sublane-friendly 2-D slabs)
    emb = params["word_emb"][his_input_title]                    # (N, L, D)
    xpad = jnp.pad(emb, ((0, 0), (1, 1), (0, 0)))                # conv padding=1
    xcol = jnp.concatenate([xpad[:, k:k + L, :] for k in range(K)], axis=-1)
    xcol = xcol.reshape(N * L, K * D)                            # (N*L, K*D)
    mask = (his_input_title > 0).astype(jnp.float32)             # (N, L)

    # long-term user embedding: user_embedding(u) + user_bias(u)  -> (B, H)
    h0 = params["user_emb"][user_indexes] + params["user_bias"][user_indexes]
    B, H = h0.shape

    return pl.pallas_call(
        lstur_user_kernel,
        out_shape=jax.ShapeDtypeStruct((B, H), jnp.float32),
        grid_spec=pltpu.PrefetchScalarGridSpec(
            num_scalar_prefetch=0,
            grid=(1,),
            in_specs=[
                pl.BlockSpec((N * L, K * D), lambda i: (0, 0)),  # xcol
                pl.BlockSpec((N, L),         lambda i: (0, 0)),  # mask
                pl.BlockSpec((K * D, F),     lambda i: (0, 0)),  # wconv
                pl.BlockSpec((1, F),         lambda i: (0, 0)),  # bconv
                pl.BlockSpec((1, F),         lambda i: (0, 0)),  # watt
                pl.BlockSpec((1, 1),         lambda i: (0, 0)),  # batt
                pl.BlockSpec((B, H),         lambda i: (0, 0)),  # h0
                pl.BlockSpec((F, 3 * H),     lambda i: (0, 0)),  # wih
                pl.BlockSpec((H, 3 * H),     lambda i: (0, 0)),  # whh
                pl.BlockSpec((1, 3 * H),     lambda i: (0, 0)),  # bih
                pl.BlockSpec((1, 3 * H),     lambda i: (0, 0)),  # bhh
            ],
            out_specs=pl.BlockSpec((B, H), lambda i: (0, 0)),
        ),
        compiler_params=pltpu.CompilerParams(dimension_semantics=("arbitrary",)),
    )(xcol, mask, params["wconv"], params["bconv"], params["watt"], params["batt"],
      h0, params["wih"], params["whh"], params["bih"], params["bhh"])


# ----------------------------- plain-JAX reference -----------------------------
def reference_forward(user_indexes, his_input_title, p):
    emb = p["word_emb"][his_input_title]
    xpad = jnp.pad(emb, ((0, 0), (1, 1), (0, 0)))
    L = his_input_title.shape[1]
    wconv_kdf = p["wconv"].reshape(KERNEL_SIZE, WORD_DIM, NUM_FILTERS)
    acc = jnp.zeros((his_input_title.shape[0], L, NUM_FILTERS), jnp.float32)
    for k in range(KERNEL_SIZE):
        acc = acc + jnp.einsum("nld,df->nlf", xpad[:, k:k + L], wconv_kdf[k])
    y = acc + p["bconv"][None]
    a = jnp.tanh(jnp.einsum("nlf,f->nl", y, p["watt"][0]) + p["batt"][0, 0])
    a = jnp.exp(a) * (his_input_title > 0).astype(jnp.float32)
    b = jnp.sum(a, axis=1, keepdims=True) + 1e-6
    alpha = (a / b)[:, :, None]
    e_t = jnp.sum(alpha * y, axis=1)
    e_seq = e_t.reshape(HIS_SIZE, -1, NUM_FILTERS)
    h = p["user_emb"][user_indexes] + p["user_bias"][user_indexes]
    H = GRU_UNIT

    def step(h, x):
        gx = x @ p["wih"] + p["bih"][0]
        gh = h @ p["whh"] + p["bhh"][0]
        r = jax.nn.sigmoid(gx[:, :H] + gh[:, :H])
        z = jax.nn.sigmoid(gx[:, H:2 * H] + gh[:, H:2 * H])
        n = jnp.tanh(gx[:, 2 * H:] + r * gh[:, 2 * H:])
        return (1.0 - z) * n + z * h, None

    h_final, _ = lax.scan(step, h, e_seq)
    return h_final


# ----------------------------- param init -----------------------------
def xavier_uniform(key, shape, fan_in, fan_out):
    a = (6.0 / (fan_in + fan_out)) ** 0.5
    return jax.random.uniform(key, shape, jnp.float32, -a, a)


def init_params(key):
    ks = jax.random.split(key, 10)
    D, F, H, K = WORD_DIM, NUM_FILTERS, GRU_UNIT, KERNEL_SIZE
    # word embedding (loaded from file in the original; random here)
    word_emb = 0.1 * jax.random.normal(ks[0], (NUM_WORDS, D), jnp.float32)
    # Conv1d weight: torch (F, D, K) -> im2col weight (K*D, F) with wconv[k*D+d, f] = W[f, d, k]
    conv_w = xavier_uniform(ks[1], (F, D, K), D * K, F * K)
    wconv = jnp.transpose(conv_w, (2, 1, 0)).reshape(K * D, F)
    bconv = jnp.zeros((1, F), jnp.float32)                     # reinit: zeros_
    # news attention linear: (1, F) weight, scalar bias
    watt = xavier_uniform(ks[2], (1, F), F, 1)
    batt = jnp.zeros((1, 1), jnp.float32)                      # reinit: zeros_
    # user embeddings (zero-init in reinit; small random here to exercise the path)
    user_emb = 0.05 * jax.random.normal(ks[3], (NUM_USERS, H), jnp.float32)
    user_bias = 0.05 * jax.random.normal(ks[4], (NUM_USERS, 1), jnp.float32)
    # GRU: torch weight_ih (3H, F), weight_hh (3H, H), gate order [r, z, n] -> packed (.., 3H)
    w_ih = xavier_uniform(ks[5], (3 * H, F), F, 3 * H)
    w_hh = xavier_uniform(ks[6], (3 * H, H), H, 3 * H)
    wih = jnp.transpose(w_ih)                                  # (F, 3H)
    whh = jnp.transpose(w_hh)                                  # (H, 3H)
    bih = jnp.zeros((1, 3 * H), jnp.float32)                   # reinit: zeros_
    bhh = jnp.zeros((1, 3 * H), jnp.float32)                   # reinit: zeros_
    return dict(word_emb=word_emb, wconv=wconv, bconv=bconv, watt=watt, batt=batt,
                user_emb=user_emb, user_bias=user_bias, wih=wih, whh=whh, bih=bih, bhh=bhh)


# ----------------------------- main -----------------------------
if __name__ == "__main__":
    key = jax.random.PRNGKey(0)
    kp, ku, kt = jax.random.split(key, 3)
    params = init_params(kp)

    user_indexes = jax.random.randint(ku, (BATCH,), 0, NUM_USERS, dtype=jnp.int32)
    his_input_title = jax.random.randint(kt, (HIS_SIZE * BATCH, DOC_SIZE), 0, NUM_WORDS,
                                         dtype=jnp.int32)   # 0 acts as padding id (mask)

    out = user_encoder_forward(user_indexes, his_input_title, params)
    out = jax.block_until_ready(out)

    ref = reference_forward(user_indexes, his_input_title, params)
    assert out.shape == (BATCH, GRU_UNIT)
    assert jnp.allclose(out, ref, atol=1e-4, rtol=1e-4), (out, ref)
    print("KERNEL_OK")
</pallas_src>

<mosaic_0001>
module attributes {stable_mosaic.version = 11 : i64} {
  func.func @lstur_user_kernel(%arg0: i32, %arg1: memref<256x96xf32, #tpu.memory_space<vmem>>, %arg2: memref<16x16xf32, #tpu.memory_space<vmem>>, %arg3: memref<96x32xf32, #tpu.memory_space<vmem>>, %arg4: memref<1x32xf32, #tpu.memory_space<vmem>>, %arg5: memref<1x32xf32, #tpu.memory_space<vmem>>, %arg6: memref<1x1xf32, #tpu.memory_space<vmem>>, %arg7: memref<2x32xf32, #tpu.memory_space<vmem>>, %arg8: memref<32x96xf32, #tpu.memory_space<vmem>>, %arg9: memref<32x96xf32, #tpu.memory_space<vmem>>, %arg10: memref<1x96xf32, #tpu.memory_space<vmem>>, %arg11: memref<1x96xf32, #tpu.memory_space<vmem>>, %arg12: memref<2x32xf32, #tpu.memory_space<vmem>>) attributes {dimension_semantics = [#tpu.dimension_semantics<arbitrary>], iteration_bounds = array<i64: 1>, scalar_prefetch = 0 : i64, scratch_operands = 0 : i64, tpu.core_type = #tpu.core_type<tc>, window_params = [{pipeline_mode = #tpu.pipeline_mode<synchronous>, transform_indices = @transform_0, window_bounds = array<i64: 256, 96>}, {pipeline_mode = #tpu.pipeline_mode<synchronous>, transform_indices = @transform_1, window_bounds = array<i64: 16, 16>}, {pipeline_mode = #tpu.pipeline_mode<synchronous>, transform_indices = @transform_2, window_bounds = array<i64: 96, 32>}, {pipeline_mode = #tpu.pipeline_mode<synchronous>, transform_indices = @transform_3, window_bounds = array<i64: 1, 32>}, {pipeline_mode = #tpu.pipeline_mode<synchronous>, transform_indices = @transform_4, window_bounds = array<i64: 1, 32>}, {pipeline_mode = #tpu.pipeline_mode<synchronous>, transform_indices = @transform_5, window_bounds = array<i64: 1, 1>}, {pipeline_mode = #tpu.pipeline_mode<synchronous>, transform_indices = @transform_6, window_bounds = array<i64: 2, 32>}, {pipeline_mode = #tpu.pipeline_mode<synchronous>, transform_indices = @transform_7, window_bounds = array<i64: 32, 96>}, {pipeline_mode = #tpu.pipeline_mode<synchronous>, transform_indices = @transform_8, window_bounds = array<i64: 32, 96>}, {pipeline_mode = #tpu.pipeline_mode<synchronous>, transform_indices = @transform_9, window_bounds = array<i64: 1, 96>}, {pipeline_mode = #tpu.pipeline_mode<synchronous>, transform_indices = @transform_10, window_bounds = array<i64: 1, 96>}, {pipeline_mode = #tpu.pipeline_mode<synchronous>, transform_indices = @transform_11, window_bounds = array<i64: 2, 32>}]} {
    %c0 = arith.constant 0 : index
    %c0_0 = arith.constant 0 : index
    %0 = vector.load %arg1[%c0, %c0_0] : memref<256x96xf32, #tpu.memory_space<vmem>>, vector<256x96xf32>
    %c0_1 = arith.constant 0 : index
    %c0_2 = arith.constant 0 : index
    %1 = vector.load %arg3[%c0_1, %c0_2] : memref<96x32xf32, #tpu.memory_space<vmem>>, vector<96x32xf32>
    %cst = arith.constant dense<0.000000e+00> : vector<256x32xf32>
    %2 = tpu.matmul %0, %1, %cst {dimension_numbers = #tpu.dot_dimension_numbers<[1], [0], [0], [1], [0, 0, 1, 1], [], []>} : vector<256x96xf32>, vector<96x32xf32>, vector<256x32xf32> -> vector<256x32xf32>
    %c0_3 = arith.constant 0 : index
    %c0_4 = arith.constant 0 : index
    %3 = vector.load %arg4[%c0_3, %c0_4] : memref<1x32xf32, #tpu.memory_space<vmem>>, vector<1x32xf32>
    %4 = vector.broadcast %3 : vector<1x32xf32> to vector<256x32xf32>
    %5 = arith.addf %2, %4 : vector<256x32xf32>
    %6 = vector.shape_cast %5 : vector<256x32xf32> to vector<16x16x32xf32>
    %c0_5 = arith.constant 0 : index
    %c0_6 = arith.constant 0 : index
    %7 = vector.load %arg5[%c0_5, %c0_6] : memref<1x32xf32, #tpu.memory_space<vmem>>, vector<1x32xf32>
    %8 = vector.shape_cast %7 : vector<1x32xf32> to vector<1x1x32xf32>
    %9 = vector.broadcast %8 : vector<1x1x32xf32> to vector<16x16x32xf32>
    %10 = arith.mulf %6, %9 : vector<16x16x32xf32>
    %cst_7 = arith.constant dense<0.000000e+00> : vector<16x16xf32>
    %11 = vector.multi_reduction <add>, %10, %cst_7 [2] : vector<16x16x32xf32> to vector<16x16xf32>
    %c0_8 = arith.constant 0 : index
    %c0_9 = arith.constant 0 : index
    %12 = vector.load %arg6[%c0_8, %c0_9] : memref<1x1xf32, #tpu.memory_space<vmem>>, vector<1x1xf32>
    %13 = vector.extract %12[0, 0] : f32 from vector<1x1xf32>
    %14 = vector.broadcast %13 : f32 to vector<16x16xf32>
    %15 = arith.addf %11, %14 : vector<16x16xf32>
    %16 = math.tanh %15 : vector<16x16xf32>
    %17 = math.exp %16 : vector<16x16xf32>
    %c0_10 = arith.constant 0 : index
    %c0_11 = arith.constant 0 : index
    %18 = vector.load %arg2[%c0_10, %c0_11] : memref<16x16xf32, #tpu.memory_space<vmem>>, vector<16x16xf32>
    %19 = arith.mulf %17, %18 : vector<16x16xf32>
    %cst_12 = arith.constant dense<0.000000e+00> : vector<16xf32>
    %20 = vector.multi_reduction <add>, %19, %cst_12 [1] : vector<16x16xf32> to vector<16xf32>
    %21 = vector.shape_cast %20 : vector<16xf32> to vector<16x1xf32>
    %cst_13 = arith.constant 9.99999997E-7 : f32
    %22 = vector.broadcast %cst_13 : f32 to vector<16x1xf32>
    %23 = arith.addf %21, %22 : vector<16x1xf32>
    %24 = vector.broadcast %23 : vector<16x1xf32> to vector<16x16xf32>
    %25 = arith.divf %19, %24 : vector<16x16xf32>
    %26 = vector.shape_cast %25 : vector<16x16xf32> to vector<16x16x1xf32>
    %27 = vector.broadcast %26 : vector<16x16x1xf32> to vector<16x16x32xf32>
    %28 = arith.mulf %27, %6 : vector<16x16x32xf32>
    %cst_14 = arith.constant dense<0.000000e+00> : vector<16x32xf32>
    %29 = vector.multi_reduction <add>, %28, %cst_14 [1] : vector<16x16x32xf32> to vector<16x32xf32>
    %c0_15 = arith.constant 0 : index
    %c0_16 = arith.constant 0 : index
    %30 = vector.load %arg8[%c0_15, %c0_16] : memref<32x96xf32, #tpu.memory_space<vmem>>, vector<32x96xf32>
    %cst_17 = arith.constant dense<0.000000e+00> : vector<16x96xf32>
    %31 = tpu.matmul %29, %30, %cst_17 {dimension_numbers = #tpu.dot_dimension_numbers<[1], [0], [0], [1], [0, 0, 1, 1], [], []>} : vector<16x32xf32>, vector<32x96xf32>, vector<16x96xf32> -> vector<16x96xf32>
    %c0_18 = arith.constant 0 : index
    %c0_19 = arith.constant 0 : index
    %32 = vector.load %arg10[%c0_18, %c0_19] : memref<1x96xf32, #tpu.memory_space<vmem>>, vector<1x96xf32>
    %33 = vector.broadcast %32 : vector<1x96xf32> to vector<16x96xf32>
    %34 = arith.addf %31, %33 : vector<16x96xf32>
    %c0_20 = arith.constant 0 : index
    %c0_21 = arith.constant 0 : index
    %35 = vector.load %arg9[%c0_20, %c0_21] : memref<32x96xf32, #tpu.memory_space<vmem>>, vector<32x96xf32>
    %c0_22 = arith.constant 0 : index
    %c0_23 = arith.constant 0 : index
    %36 = vector.load %arg11[%c0_22, %c0_23] : memref<1x96xf32, #tpu.memory_space<vmem>>, vector<1x96xf32>
    %c0_24 = arith.constant 0 : index
    %c0_25 = arith.constant 0 : index
    %37 = vector.load %arg7[%c0_24, %c0_25] : memref<2x32xf32, #tpu.memory_space<vmem>>, vector<2x32xf32>
    %38 = vector.extract_strided_slice %34 {offsets = [0, 0], sizes = [2, 96], strides = [1, 1]} : vector<16x96xf32> to vector<2x96xf32>
    %cst_26 = arith.constant dense<0.000000e+00> : vector<2x96xf32>
    %39 = tpu.matmul %37, %35, %cst_26 {dimension_numbers = #tpu.dot_dimension_numbers<[1], [0], [0], [1], [0, 0, 1, 1], [], []>} : vector<2x32xf32>, vector<32x96xf32>, vector<2x96xf32> -> vector<2x96xf32>
    %40 = vector.broadcast %36 : vector<1x96xf32> to vector<2x96xf32>
    %41 = arith.addf %39, %40 : vector<2x96xf32>
    %42 = vector.extract_strided_slice %38 {offsets = [0, 0], sizes = [2, 32], strides = [1, 1]} : vector<2x96xf32> to vector<2x32xf32>
    %43 = vector.extract_strided_slice %41 {offsets = [0, 0], sizes = [2, 32], strides = [1, 1]} : vector<2x96xf32> to vector<2x32xf32>
    %44 = arith.addf %42, %43 : vector<2x32xf32>
    %45 = arith.negf %44 : vector<2x32xf32>
    %46 = math.exp %45 : vector<2x32xf32>
    %cst_27 = arith.constant 1.000000e+00 : f32
    %47 = vector.broadcast %cst_27 : f32 to vector<2x32xf32>
    %48 = arith.addf %47, %46 : vector<2x32xf32>
    %49 = arith.divf %47, %48 : vector<2x32xf32>
    %50 = vector.extract_strided_slice %38 {offsets = [0, 32], sizes = [2, 32], strides = [1, 1]} : vector<2x96xf32> to vector<2x32xf32>
    %51 = vector.extract_strided_slice %41 {offsets = [0, 32], sizes = [2, 32], strides = [1, 1]} : vector<2x96xf32> to vector<2x32xf32>
    %52 = arith.addf %50, %51 : vector<2x32xf32>
    %53 = arith.negf %52 : vector<2x32xf32>
    %54 = math.exp %53 : vector<2x32xf32>
    %cst_28 = arith.constant 1.000000e+00 : f32
    %55 = vector.broadcast %cst_28 : f32 to vector<2x32xf32>
    %56 = arith.addf %55, %54 : vector<2x32xf32>
    %57 = arith.divf %55, %56 : vector<2x32xf32>
    %58 = vector.extract_strided_slice %38 {offsets = [0, 64], sizes = [2, 32], strides = [1, 1]} : vector<2x96xf32> to vector<2x32xf32>
    %59 = vector.extract_strided_slice %41 {offsets = [0, 64], sizes = [2, 32], strides = [1, 1]} : vector<2x96xf32> to vector<2x32xf32>
    %60 = arith.mulf %49, %59 : vector<2x32xf32>
    %61 = arith.addf %58, %60 : vector<2x32xf32>
    %62 = math.tanh %61 : vector<2x32xf32>
    %cst_29 = arith.constant 1.000000e+00 : f32
    %63 = vector.broadcast %cst_29 : f32 to vector<2x32xf32>
    %64 = arith.subf %63, %57 : vector<2x32xf32>
    %65 = arith.mulf %64, %62 : vector<2x32xf32>
    %66 = arith.mulf %57, %37 : vector<2x32xf32>
    %67 = arith.addf %65, %66 : vector<2x32xf32>
    %68 = vector.extract_strided_slice %34 {offsets = [2, 0], sizes = [2, 96], strides = [1, 1]} : vector<16x96xf32> to vector<2x96xf32>
    %cst_30 = arith.constant dense<0.000000e+00> : vector<2x96xf32>
    %69 = tpu.matmul %67, %35, %cst_30 {dimension_numbers = #tpu.dot_dimension_numbers<[1], [0], [0], [1], [0, 0, 1, 1], [], []>} : vector<2x32xf32>, vector<32x96xf32>, vector<2x96xf32> -> vector<2x96xf32>
    %70 = vector.broadcast %36 : vector<1x96xf32> to vector<2x96xf32>
    %71 = arith.addf %69, %70 : vector<2x96xf32>
    %72 = vector.extract_strided_slice %68 {offsets = [0, 0], sizes = [2, 32], strides = [1, 1]} : vector<2x96xf32> to vector<2x32xf32>
    %73 = vector.extract_strided_slice %71 {offsets = [0, 0], sizes = [2, 32], strides = [1, 1]} : vector<2x96xf32> to vector<2x32xf32>
    %74 = arith.addf %72, %73 : vector<2x32xf32>
    %75 = arith.negf %74 : vector<2x32xf32>
    %76 = math.exp %75 : vector<2x32xf32>
    %cst_31 = arith.constant 1.000000e+00 : f32
    %77 = vector.broadcast %cst_31 : f32 to vector<2x32xf32>
    %78 = arith.addf %77, %76 : vector<2x32xf32>
    %79 = arith.divf %77, %78 : vector<2x32xf32>
    %80 = vector.extract_strided_slice %68 {offsets = [0, 32], sizes = [2, 32], strides = [1, 1]} : vector<2x96xf32> to vector<2x32xf32>
    %81 = vector.extract_strided_slice %71 {offsets = [0, 32], sizes = [2, 32], strides = [1, 1]} : vector<2x96xf32> to vector<2x32xf32>
    %82 = arith.addf %80, %81 : vector<2x32xf32>
    %83 = arith.negf %82 : vector<2x32xf32>
    %84 = math.exp %83 : vector<2x32xf32>
    %cst_32 = arith.constant 1.000000e+00 : f32
    %85 = vector.broadcast %cst_32 : f32 to vector<2x32xf32>
    %86 = arith.addf %85, %84 : vector<2x32xf32>
    %87 = arith.divf %85, %86 : vector<2x32xf32>
    %88 = vector.extract_strided_slice %68 {offsets = [0, 64], sizes = [2, 32], strides = [1, 1]} : vector<2x96xf32> to vector<2x32xf32>
    %89 = vector.extract_strided_slice %71 {offsets = [0, 64], sizes = [2, 32], strides = [1, 1]} : vector<2x96xf32> to vector<2x32xf32>
    %90 = arith.mulf %79, %89 : vector<2x32xf32>
    %91 = arith.addf %88, %90 : vector<2x32xf32>
    %92 = math.tanh %91 : vector<2x32xf32>
    %cst_33 = arith.constant 1.000000e+00 : f32
    %93 = vector.broadcast %cst_33 : f32 to vector<2x32xf32>
    %94 = arith.subf %93, %87 : vector<2x32xf32>
    %95 = arith.mulf %94, %92 : vector<2x32xf32>
    %96 = arith.mulf %87, %67 : vector<2x32xf32>
    %97 = arith.addf %95, %96 : vector<2x32xf32>
    %98 = vector.extract_strided_slice %34 {offsets = [4, 0], sizes = [2, 96], strides = [1, 1]} : vector<16x96xf32> to vector<2x96xf32>
    %cst_34 = arith.constant dense<0.000000e+00> : vector<2x96xf32>
    %99 = tpu.matmul %97, %35, %cst_34 {dimension_numbers = #tpu.dot_dimension_numbers<[1], [0], [0], [1], [0, 0, 1, 1], [], []>} : vector<2x32xf32>, vector<32x96xf32>, vector<2x96xf32> -> vector<2x96xf32>
    %100 = vector.broadcast %36 : vector<1x96xf32> to vector<2x96xf32>
    %101 = arith.addf %99, %100 : vector<2x96xf32>
    %102 = vector.extract_strided_slice %98 {offsets = [0, 0], sizes = [2, 32], strides = [1, 1]} : vector<2x96xf32> to vector<2x32xf32>
    %103 = vector.extract_strided_slice %101 {offsets = [0, 0], sizes = [2, 32], strides = [1, 1]} : vector<2x96xf32> to vector<2x32xf32>
    %104 = arith.addf %102, %103 : vector<2x32xf32>
    %105 = arith.negf %104 : vector<2x32xf32>
    %106 = math.exp %105 : vector<2x32xf32>
    %cst_35 = arith.constant 1.000000e+00 : f32
    %107 = vector.broadcast %cst_35 : f32 to vector<2x32xf32>
    %108 = arith.addf %107, %106 : vector<2x32xf32>
    %109 = arith.divf %107, %108 : vector<2x32xf32>
    %110 = vector.extract_strided_slice %98 {offsets = [0, 32], sizes = [2, 32], strides = [1, 1]} : vector<2x96xf32> to vector<2x32xf32>
    %111 = vector.extract_strided_slice %101 {offsets = [0, 32], sizes = [2, 32], strides = [1, 1]} : vector<2x96xf32> to vector<2x32xf32>
    %112 = arith.addf %110, %111 : vector<2x32xf32>
    %113 = arith.negf %112 : vector<2x32xf32>
    %114 = math.exp %113 : vector<2x32xf32>
    %cst_36 = arith.constant 1.000000e+00 : f32
    %115 = vector.broadcast %cst_36 : f32 to vector<2x32xf32>
    %116 = arith.addf %115, %114 : vector<2x32xf32>
    %117 = arith.divf %115, %116 : vector<2x32xf32>
    %118 = vector.extract_strided_slice %98 {offsets = [0, 64], sizes = [2, 32], strides = [1, 1]} : vector<2x96xf32> to vector<2x32xf32>
    %119 = vector.extract_strided_slice %101 {offsets = [0, 64], sizes = [2, 32], strides = [1, 1]} : vector<2x96xf32> to vector<2x32xf32>
    %120 = arith.mulf %109, %119 : vector<2x32xf32>
    %121 = arith.addf %118, %120 : vector<2x32xf32>
    %122 = math.tanh %121 : vector<2x32xf32>
    %cst_37 = arith.constant 1.000000e+00 : f32
    %123 = vector.broadcast %cst_37 : f32 to vector<2x32xf32>
    %124 = arith.subf %123, %117 : vector<2x32xf32>
    %125 = arith.mulf %124, %122 : vector<2x32xf32>
    %126 = arith.mulf %117, %97 : vector<2x32xf32>
    %127 = arith.addf %125, %126 : vector<2x32xf32>
    %128 = vector.extract_strided_slice %34 {offsets = [6, 0], sizes = [2, 96], strides = [1, 1]} : vector<16x96xf32> to vector<2x96xf32>
    %cst_38 = arith.constant dense<0.000000e+00> : vector<2x96xf32>
    %129 = tpu.matmul %127, %35, %cst_38 {dimension_numbers = #tpu.dot_dimension_numbers<[1], [0], [0], [1], [0, 0, 1, 1], [], []>} : vector<2x32xf32>, vector<32x96xf32>, vector<2x96xf32> -> vector<2x96xf32>
    %130 = vector.broadcast %36 : vector<1x96xf32> to vector<2x96xf32>
    %131 = arith.addf %129, %130 : vector<2x96xf32>
    %132 = vector.extract_strided_slice %128 {offsets = [0, 0], sizes = [2, 32], strides = [1, 1]} : vector<2x96xf32> to vector<2x32xf32>
    %133 = vector.extract_strided_slice %131 {offsets = [0, 0], sizes = [2, 32], strides = [1, 1]} : vector<2x96xf32> to vector<2x32xf32>
    %134 = arith.addf %132, %133 : vector<2x32xf32>
    %135 = arith.negf %134 : vector<2x32xf32>
    %136 = math.exp %135 : vector<2x32xf32>
    %cst_39 = arith.constant 1.000000e+00 : f32
    %137 = vector.broadcast %cst_39 : f32 to vector<2x32xf32>
    %138 = arith.addf %137, %136 : vector<2x32xf32>
    %139 = arith.divf %137, %138 : vector<2x32xf32>
    %140 = vector.extract_strided_slice %128 {offsets = [0, 32], sizes = [2, 32], strides = [1, 1]} : vector<2x96xf32> to vector<2x32xf32>
    %141 = vector.extract_strided_slice %131 {offsets = [0, 32], sizes = [2, 32], strides = [1, 1]} : vector<2x96xf32> to vector<2x32xf32>
    %142 = arith.addf %140, %141 : vector<2x32xf32>
    %143 = arith.negf %142 : vector<2x32xf32>
    %144 = math.exp %143 : vector<2x32xf32>
    %cst_40 = arith.constant 1.000000e+00 : f32
    %145 = vector.broadcast %cst_40 : f32 to vector<2x32xf32>
    %146 = arith.addf %145, %144 : vector<2x32xf32>
    %147 = arith.divf %145, %146 : vector<2x32xf32>
    %148 = vector.extract_strided_slice %128 {offsets = [0, 64], sizes = [2, 32], strides = [1, 1]} : vector<2x96xf32> to vector<2x32xf32>
    %149 = vector.extract_strided_slice %131 {offsets = [0, 64], sizes = [2, 32], strides = [1, 1]} : vector<2x96xf32> to vector<2x32xf32>
    %150 = arith.mulf %139, %149 : vector<2x32xf32>
    %151 = arith.addf %148, %150 : vector<2x32xf32>
    %152 = math.tanh %151 : vector<2x32xf32>
    %cst_41 = arith.constant 1.000000e+00 : f32
    %153 = vector.broadcast %cst_41 : f32 to vector<2x32xf32>
    %154 = arith.subf %153, %147 : vector<2x32xf32>
    %155 = arith.mulf %154, %152 : vector<2x32xf32>
    %156 = arith.mulf %147, %127 : vector<2x32xf32>
    %157 = arith.addf %155, %156 : vector<2x32xf32>
    %158 = vector.extract_strided_slice %34 {offsets = [8, 0], sizes = [2, 96], strides = [1, 1]} : vector<16x96xf32> to vector<2x96xf32>
    %cst_42 = arith.constant dense<0.000000e+00> : vector<2x96xf32>
    %159 = tpu.matmul %157, %35, %cst_42 {dimension_numbers = #tpu.dot_dimension_numbers<[1], [0], [0], [1], [0, 0, 1, 1], [], []>} : vector<2x32xf32>, vector<32x96xf32>, vector<2x96xf32> -> vector<2x96xf32>
    %160 = vector.broadcast %36 : vector<1x96xf32> to vector<2x96xf32>
    %161 = arith.addf %159, %160 : vector<2x96xf32>
    %162 = vector.extract_strided_slice %158 {offsets = [0, 0], sizes = [2, 32], strides = [1, 1]} : vector<2x96xf32> to vector<2x32xf32>
    %163 = vector.extract_strided_slice %161 {offsets = [0, 0], sizes = [2, 32], strides = [1, 1]} : vector<2x96xf32> to vector<2x32xf32>
    %164 = arith.addf %162, %163 : vector<2x32xf32>
    %165 = arith.negf %164 : vector<2x32xf32>
    %166 = math.exp %165 : vector<2x32xf32>
    %cst_43 = arith.constant 1.000000e+00 : f32
    %167 = vector.broadcast %cst_43 : f32 to vector<2x32xf32>
    %168 = arith.addf %167, %166 : vector<2x32xf32>
    %169 = arith.divf %167, %168 : vector<2x32xf32>
    %170 = vector.extract_strided_slice %158 {offsets = [0, 32], sizes = [2, 32], strides = [1, 1]} : vector<2x96xf32> to vector<2x32xf32>
    %171 = vector.extract_strided_slice %161 {offsets = [0, 32], sizes = [2, 32], strides = [1, 1]} : vector<2x96xf32> to vector<2x32xf32>
    %172 = arith.addf %170, %171 : vector<2x32xf32>
    %173 = arith.negf %172 : vector<2x32xf32>
    %174 = math.exp %173 : vector<2x32xf32>
    %cst_44 = arith.constant 1.000000e+00 : f32
    %175 = vector.broadcast %cst_44 : f32 to vector<2x32xf32>
    %176 = arith.addf %175, %174 : vector<2x32xf32>
    %177 = arith.divf %175, %176 : vector<2x32xf32>
    %178 = vector.extract_strided_slice %158 {offsets = [0, 64], sizes = [2, 32], strides = [1, 1]} : vector<2x96xf32> to vector<2x32xf32>
    %179 = vector.extract_strided_slice %161 {offsets = [0, 64], sizes = [2, 32], strides = [1, 1]} : vector<2x96xf32> to vector<2x32xf32>
    %180 = arith.mulf %169, %179 : vector<2x32xf32>
    %181 = arith.addf %178, %180 : vector<2x32xf32>
    %182 = math.tanh %181 : vector<2x32xf32>
    %cst_45 = arith.constant 1.000000e+00 : f32
    %183 = vector.broadcast %cst_45 : f32 to vector<2x32xf32>
    %184 = arith.subf %183, %177 : vector<2x32xf32>
    %185 = arith.mulf %184, %182 : vector<2x32xf32>
    %186 = arith.mulf %177, %157 : vector<2x32xf32>
    %187 = arith.addf %185, %186 : vector<2x32xf32>
    %188 = vector.extract_strided_slice %34 {offsets = [10, 0], sizes = [2, 96], strides = [1, 1]} : vector<16x96xf32> to vector<2x96xf32>
    %cst_46 = arith.constant dense<0.000000e+00> : vector<2x96xf32>
    %189 = tpu.matmul %187, %35, %cst_46 {dimension_numbers = #tpu.dot_dimension_numbers<[1], [0], [0], [1], [0, 0, 1, 1], [], []>} : vector<2x32xf32>, vector<32x96xf32>, vector<2x96xf32> -> vector<2x96xf32>
    %190 = vector.broadcast %36 : vector<1x96xf32> to vector<2x96xf32>
    %191 = arith.addf %189, %190 : vector<2x96xf32>
    %192 = vector.extract_strided_slice %188 {offsets = [0, 0], sizes = [2, 32], strides = [1, 1]} : vector<2x96xf32> to vector<2x32xf32>
    %193 = vector.extract_strided_slice %191 {offsets = [0, 0], sizes = [2, 32], strides = [1, 1]} : vector<2x96xf32> to vector<2x32xf32>
    %194 = arith.addf %192, %193 : vector<2x32xf32>
    %195 = arith.negf %194 : vector<2x32xf32>
    %196 = math.exp %195 : vector<2x32xf32>
    %cst_47 = arith.constant 1.000000e+00 : f32
    %197 = vector.broadcast %cst_47 : f32 to vector<2x32xf32>
    %198 = arith.addf %197, %196 : vector<2x32xf32>
    %199 = arith.divf %197, %198 : vector<2x32xf32>
    %200 = vector.extract_strided_slice %188 {offsets = [0, 32], sizes = [2, 32], strides = [1, 1]} : vector<2x96xf32> to vector<2x32xf32>
    %201 = vector.extract_strided_slice %191 {offsets = [0, 32], sizes = [2, 32], strides = [1, 1]} : vector<2x96xf32> to vector<2x32xf32>
    %202 = arith.addf %200, %201 : vector<2x32xf32>
    %203 = arith.negf %202 : vector<2x32xf32>
    %204 = math.exp %203 : vector<2x32xf32>
    %cst_48 = arith.constant 1.000000e+00 : f32
    %205 = vector.broadcast %cst_48 : f32 to vector<2x32xf32>
    %206 = arith.addf %205, %204 : vector<2x32xf32>
    %207 = arith.divf %205, %206 : vector<2x32xf32>
    %208 = vector.extract_strided_slice %188 {offsets = [0, 64], sizes = [2, 32], strides = [1, 1]} : vector<2x96xf32> to vector<2x32xf32>
    %209 = vector.extract_strided_slice %191 {offsets = [0, 64], sizes = [2, 32], strides = [1, 1]} : vector<2x96xf32> to vector<2x32xf32>
    %210 = arith.mulf %199, %209 : vector<2x32xf32>
    %211 = arith.addf %208, %210 : vector<2x32xf32>
    %212 = math.tanh %211 : vector<2x32xf32>
    %cst_49 = arith.constant 1.000000e+00 : f32
    %213 = vector.broadcast %cst_49 : f32 to vector<2x32xf32>
    %214 = arith.subf %213, %207 : vector<2x32xf32>
    %215 = arith.mulf %214, %212 : vector<2x32xf32>
    %216 = arith.mulf %207, %187 : vector<2x32xf32>
    %217 = arith.addf %215, %216 : vector<2x32xf32>
    %218 = vector.extract_strided_slice %34 {offsets = [12, 0], sizes = [2, 96], strides = [1, 1]} : vector<16x96xf32> to vector<2x96xf32>
    %cst_50 = arith.constant dense<0.000000e+00> : vector<2x96xf32>
    %219 = tpu.matmul %217, %35, %cst_50 {dimension_numbers = #tpu.dot_dimension_numbers<[1], [0], [0], [1], [0, 0, 1, 1], [], []>} : vector<2x32xf32>, vector<32x96xf32>, vector<2x96xf32> -> vector<2x96xf32>
    %220 = vector.broadcast %36 : vector<1x96xf32> to vector<2x96xf32>
    %221 = arith.addf %219, %220 : vector<2x96xf32>
    %222 = vector.extract_strided_slice %218 {offsets = [0, 0], sizes = [2, 32], strides = [1, 1]} : vector<2x96xf32> to vector<2x32xf32>
    %223 = vector.extract_strided_slice %221 {offsets = [0, 0], sizes = [2, 32], strides = [1, 1]} : vector<2x96xf32> to vector<2x32xf32>
    %224 = arith.addf %222, %223 : vector<2x32xf32>
    %225 = arith.negf %224 : vector<2x32xf32>
    %226 = math.exp %225 : vector<2x32xf32>
    %cst_51 = arith.constant 1.000000e+00 : f32
    %227 = vector.broadcast %cst_51 : f32 to vector<2x32xf32>
    %228 = arith.addf %227, %226 : vector<2x32xf32>
    %229 = arith.divf %227, %228 : vector<2x32xf32>
    %230 = vector.extract_strided_slice %218 {offsets = [0, 32], sizes = [2, 32], strides = [1, 1]} : vector<2x96xf32> to vector<2x32xf32>
    %231 = vector.extract_strided_slice %221 {offsets = [0, 32], sizes = [2, 32], strides = [1, 1]} : vector<2x96xf32> to vector<2x32xf32>
    %232 = arith.addf %230, %231 : vector<2x32xf32>
    %233 = arith.negf %232 : vector<2x32xf32>
    %234 = math.exp %233 : vector<2x32xf32>
    %cst_52 = arith.constant 1.000000e+00 : f32
    %235 = vector.broadcast %cst_52 : f32 to vector<2x32xf32>
    %236 = arith.addf %235, %234 : vector<2x32xf32>
    %237 = arith.divf %235, %236 : vector<2x32xf32>
    %238 = vector.extract_strided_slice %218 {offsets = [0, 64], sizes = [2, 32], strides = [1, 1]} : vector<2x96xf32> to vector<2x32xf32>
    %239 = vector.extract_strided_slice %221 {offsets = [0, 64], sizes = [2, 32], strides = [1, 1]} : vector<2x96xf32> to vector<2x32xf32>
    %240 = arith.mulf %229, %239 : vector<2x32xf32>
    %241 = arith.addf %238, %240 : vector<2x32xf32>
    %242 = math.tanh %241 : vector<2x32xf32>
    %cst_53 = arith.constant 1.000000e+00 : f32
    %243 = vector.broadcast %cst_53 : f32 to vector<2x32xf32>
    %244 = arith.subf %243, %237 : vector<2x32xf32>
    %245 = arith.mulf %244, %242 : vector<2x32xf32>
    %246 = arith.mulf %237, %217 : vector<2x32xf32>
    %247 = arith.addf %245, %246 : vector<2x32xf32>
    %248 = vector.extract_strided_slice %34 {offsets = [14, 0], sizes = [2, 96], strides = [1, 1]} : vector<16x96xf32> to vector<2x96xf32>
    %cst_54 = arith.constant dense<0.000000e+00> : vector<2x96xf32>
    %249 = tpu.matmul %247, %35, %cst_54 {dimension_numbers = #tpu.dot_dimension_numbers<[1], [0], [0], [1], [0, 0, 1, 1], [], []>} : vector<2x32xf32>, vector<32x96xf32>, vector<2x96xf32> -> vector<2x96xf32>
    %250 = vector.broadcast %36 : vector<1x96xf32> to vector<2x96xf32>
    %251 = arith.addf %249, %250 : vector<2x96xf32>
    %252 = vector.extract_strided_slice %248 {offsets = [0, 0], sizes = [2, 32], strides = [1, 1]} : vector<2x96xf32> to vector<2x32xf32>
    %253 = vector.extract_strided_slice %251 {offsets = [0, 0], sizes = [2, 32], strides = [1, 1]} : vector<2x96xf32> to vector<2x32xf32>
    %254 = arith.addf %252, %253 : vector<2x32xf32>
    %255 = arith.negf %254 : vector<2x32xf32>
    %256 = math.exp %255 : vector<2x32xf32>
    %cst_55 = arith.constant 1.000000e+00 : f32
    %257 = vector.broadcast %cst_55 : f32 to vector<2x32xf32>
    %258 = arith.addf %257, %256 : vector<2x32xf32>
    %259 = arith.divf %257, %258 : vector<2x32xf32>
    %260 = vector.extract_strided_slice %248 {offsets = [0, 32], sizes = [2, 32], strides = [1, 1]} : vector<2x96xf32> to vector<2x32xf32>
    %261 = vector.extract_strided_slice %251 {offsets = [0, 32], sizes = [2, 32], strides = [1, 1]} : vector<2x96xf32> to vector<2x32xf32>
    %262 = arith.addf %260, %261 : vector<2x32xf32>
    %263 = arith.negf %262 : vector<2x32xf32>
    %264 = math.exp %263 : vector<2x32xf32>
    %cst_56 = arith.constant 1.000000e+00 : f32
    %265 = vector.broadcast %cst_56 : f32 to vector<2x32xf32>
    %266 = arith.addf %265, %264 : vector<2x32xf32>
    %267 = arith.divf %265, %266 : vector<2x32xf32>
    %268 = vector.extract_strided_slice %248 {offsets = [0, 64], sizes = [2, 32], strides = [1, 1]} : vector<2x96xf32> to vector<2x32xf32>
    %269 = vector.extract_strided_slice %251 {offsets = [0, 64], sizes = [2, 32], strides = [1, 1]} : vector<2x96xf32> to vector<2x32xf32>
    %270 = arith.mulf %259, %269 : vector<2x32xf32>
    %271 = arith.addf %268, %270 : vector<2x32xf32>
    %272 = math.tanh %271 : vector<2x32xf32>
    %cst_57 = arith.constant 1.000000e+00 : f32
    %273 = vector.broadcast %cst_57 : f32 to vector<2x32xf32>
    %274 = arith.subf %273, %267 : vector<2x32xf32>
    %275 = arith.mulf %274, %272 : vector<2x32xf32>
    %276 = arith.mulf %267, %247 : vector<2x32xf32>
    %277 = arith.addf %275, %276 : vector<2x32xf32>
    %c0_58 = arith.constant 0 : index
    %c0_59 = arith.constant 0 : index
    %278 = vector.load %arg12[%c0_58, %c0_59] : memref<2x32xf32, #tpu.memory_space<vmem>>, vector<2x32xf32>
    tpu.vector_store %arg12[%c0_58, %c0_59], %277 {strides = array<i32>} : memref<2x32xf32, #tpu.memory_space<vmem>>, vector<2x32xf32>,
    return
  }
  func.func @transform_0(%arg0: i32) -> (i32, i32) {
    %c0_i32 = arith.constant 0 : i32
    %c0_i32_0 = arith.constant 0 : i32
    %c0_i32_1 = arith.constant 0 : i32
    return %c0_i32, %c0_i32_0 : i32, i32
  }
  func.func @transform_1(%arg0: i32) -> (i32, i32) {
    %c0_i32 = arith.constant 0 : i32
    %c0_i32_0 = arith.constant 0 : i32
    %c0_i32_1 = arith.constant 0 : i32
    return %c0_i32, %c0_i32_0 : i32, i32
  }
  func.func @transform_2(%arg0: i32) -> (i32, i32) {
    %c0_i32 = arith.constant 0 : i32
    %c0_i32_0 = arith.constant 0 : i32
    %c0_i32_1 = arith.constant 0 : i32
    return %c0_i32, %c0_i32_0 : i32, i32
  }
  func.func @transform_3(%arg0: i32) -> (i32, i32) {
    %c0_i32 = arith.constant 0 : i32
    %c0_i32_0 = arith.constant 0 : i32
    %c0_i32_1 = arith.constant 0 : i32
    return %c0_i32, %c0_i32_0 : i32, i32
  }
  func.func @transform_4(%arg0: i32) -> (i32, i32) {
    %c0_i32 = arith.constant 0 : i32
    %c0_i32_0 = arith.constant 0 : i32
    %c0_i32_1 = arith.constant 0 : i32
    return %c0_i32, %c0_i32_0 : i32, i32
  }
  func.func @transform_5(%arg0: i32) -> (i32, i32) {
    %c0_i32 = arith.constant 0 : i32
    %c0_i32_0 = arith.constant 0 : i32
    %c0_i32_1 = arith.constant 0 : i32
    return %c0_i32, %c0_i32_0 : i32, i32
  }
  func.func @transform_6(%arg0: i32) -> (i32, i32) {
    %c0_i32 = arith.constant 0 : i32
    %c0_i32_0 = arith.constant 0 : i32
    %c0_i32_1 = arith.constant 0 : i32
    return %c0_i32, %c0_i32_0 : i32, i32
  }
  func.func @transform_7(%arg0: i32) -> (i32, i32) {
    %c0_i32 = arith.constant 0 : i32
    %c0_i32_0 = arith.constant 0 : i32
    %c0_i32_1 = arith.constant 0 : i32
    return %c0_i32, %c0_i32_0 : i32, i32
  }
  func.func @transform_8(%arg0: i32) -> (i32, i32) {
    %c0_i32 = arith.constant 0 : i32
    %c0_i32_0 = arith.constant 0 : i32
    %c0_i32_1 = arith.constant 0 : i32
    return %c0_i32, %c0_i32_0 : i32, i32
  }
  func.func @transform_9(%arg0: i32) -> (i32, i32) {
    %c0_i32 = arith.constant 0 : i32
    %c0_i32_0 = arith.constant 0 : i32
    %c0_i32_1 = arith.constant 0 : i32
    return %c0_i32, %c0_i32_0 : i32, i32
  }
  func.func @transform_10(%arg0: i32) -> (i32, i32) {
    %c0_i32 = arith.constant 0 : i32
    %c0_i32_0 = arith.constant 0 : i32
    %c0_i32_1 = arith.constant 0 : i32
    return %c0_i32, %c0_i32_0 : i32, i32
  }
  func.func @transform_11(%arg0: i32) -> (i32, i32) {
    %c0_i32 = arith.constant 0 : i32
    %c0_i32_0 = arith.constant 0 : i32
    %c0_i32_1 = arith.constant 0 : i32
    return %c0_i32, %c0_i32_0 : i32, i32
  }
}

</mosaic_0001>

<llo_original>
// kernel: user_encoder_forward.1
$region0: #{user_encoder_forward.1}
  #allocation0 [shape = 'u32[]', space=smem, size = 0x4, offset = 0x4, fixed_abs, tag = 'smem constant byte address 0x4 - core index']
  #allocation1 [shape = 'u32[144,128]{1,0:T(1,128)}', space=vmem, size = 0x12000, scoped, tag = 'internal scratch']
  #allocation2 [shape = 'f32[1,1]{1,0:T(1,128)S(1)}', space=vmem, size = 0x200, scoped, tag = 'scoped memory for user_encoder_forward.1']
  %s0 = inlined_call_operand.vmem [shape: f32[256,96], index: 0, kind: input, shape index: {}]
  %s1 = inlined_call_operand.vmem [shape: f32[16,16], index: 1, kind: input, shape index: {}]
  %s2 = inlined_call_operand.vmem [shape: f32[96,32], index: 2, kind: input, shape index: {}]
  %s3 = inlined_call_operand.vmem [shape: f32[1,32], index: 3, kind: input, shape index: {}]
  %s4 = inlined_call_operand.vmem [shape: f32[1,32], index: 4, kind: input, shape index: {}]
  %s5 = inlined_call_operand.<no memory space> [shape: f32[1,1], index: 5, kind: input, shape index: {}]
  %s6 = inlined_call_operand.vmem [shape: f32[2,32], index: 6, kind: input, shape index: {}]
  %s7 = inlined_call_operand.vmem [shape: f32[32,96], index: 7, kind: input, shape index: {}]
  %s8 = inlined_call_operand.vmem [shape: f32[32,96], index: 8, kind: input, shape index: {}]
  %s9 = inlined_call_operand.vmem [shape: f32[1,96], index: 9, kind: input, shape index: {}]
  %s10 = inlined_call_operand.vmem [shape: f32[1,96], index: 10, kind: input, shape index: {}]
  %s11 = inlined_call_operand.hbm [shape: f32[2,32], index: 11, kind: output, shape index: {}]
  %s12 = sld [smem:[#allocation0]]
  $region54: #{user_encoder_forward.1} parent=0
    _
  %s14 = ssub.s32 1, %s12
  %s15 = scalar_select 0, %s14, %s12
  %v16 = vstv %s5
  %17 = vst [vmem:[#allocation2] sm:$0x1] %v16
  $region1: #{user_encoder_forward.1} parent=0
    #allocation3 [shape = 'u8[1024]{0}', space=vmem, size = 0x400, scoped, tag = 'output window, operand 0, single buffered']
    #allocation4 [shape = 's32[1]{0}', space=sflag, size = 0x4, scoped, tag = 'scoped memory for user_encoder_forward.1']
    %18 = vsyncpa [#allocation4], 0
    // Predicated region
    $region2: #{user_encoder_forward.1} parent=1 // pred_check
      _
    $region3: #{user_encoder_forward.1} parent=1 // pred_check_branch
      %20 = sbr.rel (0) target = $region5
    $region4: #{user_encoder_forward.1} parent=1 // pred_region
      _
    $region5: #{user_encoder_forward.1} parent=1 // pred_fallthru
      _
    // Predicated region
    $region6: #{user_encoder_forward.1} parent=1 // pred_check
      _
    $region7: #{user_encoder_forward.1} parent=1 // pred_check_branch
      %22 = sbr.rel (0) target = $region9
    $region8: #{user_encoder_forward.1} parent=1 // pred_region
      _
    $region9: #{user_encoder_forward.1} parent=1 // pred_fallthru
      _
    // Predicated region
    $region10: #{user_encoder_forward.1} parent=1 // pred_check
      _
    $region11: #{user_encoder_forward.1} parent=1 // pred_check_branch
      %24 = sbr.rel (0) target = $region13
    $region12: #{user_encoder_forward.1} parent=1 // pred_region
      _
    $region13: #{user_encoder_forward.1} parent=1 // pred_fallthru
      _
    // Predicated region
    $region14: #{user_encoder_forward.1} parent=1 // pred_check
      _
    $region15: #{user_encoder_forward.1} parent=1 // pred_check_branch
      %26 = sbr.rel (0) target = $region17
    $region16: #{user_encoder_forward.1} parent=1 // pred_region
      _
    $region17: #{user_encoder_forward.1} parent=1 // pred_fallthru
      _
    // Predicated region
    $region18: #{user_encoder_forward.1} parent=1 // pred_check
      _
    $region19: #{user_encoder_forward.1} parent=1 // pred_check_branch
      %28 = sbr.rel (0) target = $region21
    $region20: #{user_encoder_forward.1} parent=1 // pred_region
      _
    $region21: #{user_encoder_forward.1} parent=1 // pred_fallthru
      _
    // Predicated region
    $region22: #{user_encoder_forward.1} parent=1 // pred_check
      _
    $region23: #{user_encoder_forward.1} parent=1 // pred_check_branch
      %30 = sbr.rel (0) target = $region25
    $region24: #{user_encoder_forward.1} parent=1 // pred_region
      _
    $region25: #{user_encoder_forward.1} parent=1 // pred_fallthru
      _
    // Predicated region
    $region26: #{user_encoder_forward.1} parent=1 // pred_check
      _
    $region27: #{user_encoder_forward.1} parent=1 // pred_check_branch
      %32 = sbr.rel (0) target = $region29
    $region28: #{user_encoder_forward.1} parent=1 // pred_region
      _
    $region29: #{user_encoder_forward.1} parent=1 // pred_fallthru
      _
    // Predicated region
    $region30: #{user_encoder_forward.1} parent=1 // pred_check
      _
    $region31: #{user_encoder_forward.1} parent=1 // pred_check_branch
      %34 = sbr.rel (0) target = $region33
    $region32: #{user_encoder_forward.1} parent=1 // pred_region
      _
    $region33: #{user_encoder_forward.1} parent=1 // pred_fallthru
      _
    // Predicated region
    $region34: #{user_encoder_forward.1} parent=1 // pred_check
      _
    $region35: #{user_encoder_forward.1} parent=1 // pred_check_branch
      %36 = sbr.rel (0) target = $region37
    $region36: #{user_encoder_forward.1} parent=1 // pred_region
      _
    $region37: #{user_encoder_forward.1} parent=1 // pred_fallthru
      _
    // Predicated region
    $region38: #{user_encoder_forward.1} parent=1 // pred_check
      _
    $region39: #{user_encoder_forward.1} parent=1 // pred_check_branch
      %38 = sbr.rel (0) target = $region41
    $region40: #{user_encoder_forward.1} parent=1 // pred_region
      _
    $region41: #{user_encoder_forward.1} parent=1 // pred_fallthru
      _
    // Predicated region
    $region42: #{user_encoder_forward.1} parent=1 // pred_check
      _
    $region43: #{user_encoder_forward.1} parent=1 // pred_check_branch
      %40 = sbr.rel (0) target = $region45
    $region44: #{user_encoder_forward.1} parent=1 // pred_region
      _
    $region45: #{user_encoder_forward.1} parent=1 // pred_fallthru
      _
    %v41 = vld [vmem:[%s0] sm:$0xff]
    %v42 = vld [vmem:[%s0 + $0x8] sm:$0xff]
    %v43 = vld [vmem:[%s0 + $0x10] sm:$0xff]
    %v44 = vld [vmem:[%s0 + $0x18] sm:$0xff]
    %v45 = vld [vmem:[%s0 + $0x20] sm:$0xff]
    %v46 = vld [vmem:[%s0 + $0x28] sm:$0xff]
    %v47 = vld [vmem:[%s0 + $0x30] sm:$0xff]
    %v48 = vld [vmem:[%s0 + $0x38] sm:$0xff]
    %v49 = vld [vmem:[%s0 + $0x40] sm:$0xff]
    %v50 = vld [vmem:[%s0 + $0x48] sm:$0xff]
    %v51 = vld [vmem:[%s0 + $0x50] sm:$0xff]
    %v52 = vld [vmem:[%s0 + $0x58] sm:$0xff]
    %v53 = vld [vmem:[%s0 + $0x60] sm:$0xff]
    %v54 = vld [vmem:[%s0 + $0x68] sm:$0xff]
    %v55 = vld [vmem:[%s0 + $0x70] sm:$0xff]
    %v56 = vld [vmem:[%s0 + $0x78] sm:$0xff]
    %v57 = vld [vmem:[%s0 + $0x80] sm:$0xff]
    %v58 = vld [vmem:[%s0 + $0x88] sm:$0xff]
    %v59 = vld [vmem:[%s0 + $0x90] sm:$0xff]
    %v60 = vld [vmem:[%s0 + $0x98] sm:$0xff]
    %v61 = vld [vmem:[%s0 + $0xa0] sm:$0xff]
    %v62 = vld [vmem:[%s0 + $0xa8] sm:$0xff]
    %v63 = vld [vmem:[%s0 + $0xb0] sm:$0xff]
    %v64 = vld [vmem:[%s0 + $0xb8] sm:$0xff]
    %v65 = vld [vmem:[%s0 + $0xc0] sm:$0xff]
    %v66 = vld [vmem:[%s0 + $0xc8] sm:$0xff]
    %v67 = vld [vmem:[%s0 + $0xd0] sm:$0xff]
    %v68 = vld [vmem:[%s0 + $0xd8] sm:$0xff]
    %v69 = vld [vmem:[%s0 + $0xe0] sm:$0xff]
    %v70 = vld [vmem:[%s0 + $0xe8] sm:$0xff]
    %v71 = vld [vmem:[%s0 + $0xf0] sm:$0xff]
    %v72 = vld [vmem:[%s0 + $0xf8] sm:$0xff]
    %v73 = vld [vmem:[%s2] sm:$0xff]
    %v74 = vld [vmem:[%s2 + $0x8] sm:$0xff]
    %v75 = vld [vmem:[%s2 + $0x10] sm:$0xff]
    %v76 = vld [vmem:[%s2 + $0x18] sm:$0xff]
    %v77 = vld [vmem:[%s2 + $0x20] sm:$0xff]
    %v78 = vld [vmem:[%s2 + $0x28] sm:$0xff]
    %v79 = vld [vmem:[%s2 + $0x30] sm:$0xff]
    %v80 = vld [vmem:[%s2 + $0x38] sm:$0xff]
    %v81 = vld [vmem:[%s2 + $0x40] sm:$0xff]
    %v82 = vld [vmem:[%s2 + $0x48] sm:$0xff]
    %v83 = vld [vmem:[%s2 + $0x50] sm:$0xff]
    %v84 = vld [vmem:[%s2 + $0x58] sm:$0xff]
    %v85 = vld [vmem:[%s3] sm:$0x1]
    %v87 = vlaneseq
    %v88 = vshrl.u32 %v87, 7
    %v89 = vsub.s32 0, %v88
    %v90 = vrot.slane %v85, %v89
    %vm92 = vcmask 785408
    %v94 = vsel %vm92, %v41, 0
    %v97 = vsel %vm92, %v42, 0
    %v100 = vsel %vm92, %v43, 0
    %v103 = vsel %vm92, %v44, 0
    %v106 = vsel %vm92, %v45, 0
    %v109 = vsel %vm92, %v46, 0
    %v112 = vsel %vm92, %v47, 0
    %v115 = vsel %vm92, %v48, 0
    %v118 = vsel %vm92, %v49, 0
    %v121 = vsel %vm92, %v50, 0
    %v124 = vsel %vm92, %v51, 0
    %v127 = vsel %vm92, %v52, 0
    %v130 = vsel %vm92, %v53, 0
    %v133 = vsel %vm92, %v54, 0
    %v136 = vsel %vm92, %v55, 0
    %v139 = vsel %vm92, %v56, 0
    %v142 = vsel %vm92, %v57, 0
    %v145 = vsel %vm92, %v58, 0
    %v148 = vsel %vm92, %v59, 0
    %v151 = vsel %vm92, %v60, 0
    %v154 = vsel %vm92, %v61, 0
    %v157 = vsel %vm92, %v62, 0
    %v160 = vsel %vm92, %v63, 0
    %v163 = vsel %vm92, %v64, 0
    %v166 = vsel %vm92, %v65, 0
    %v169 = vsel %vm92, %v66, 0
    %v172 = vsel %vm92, %v67, 0
    %v175 = vsel %vm92, %v68, 0
    %v178 = vsel %vm92, %v69, 0
    %v181 = vsel %vm92, %v70, 0
    %v184 = vsel %vm92, %v71, 0
    %v187 = vsel %vm92, %v72, 0
    %189 = vmatprep.subr.mxu0 0.0
    %190 = vmatpush1.msra.mxu0 %v73
    %191 = vmatprep.subr.mxu0 0.0
    %192 = vmatpush1.msra.mxu0 %v74
    %193 = vmatprep.subr.mxu0 0.0
    %194 = vmatpush1.msra.mxu0 %v75
    %195 = vmatprep.subr.mxu0 0.0
    %196 = vmatpush1.msra.mxu0 %v76
    %197 = vmatprep.subr.mxu0 0.0
    %198 = vmatpush1.msra.mxu0 %v77
    %199 = vmatprep.subr.mxu0 0.0
    %200 = vmatpush1.msra.mxu0 %v78
    %201 = vmatprep.subr.mxu0 0.0
    %202 = vmatpush1.msra.mxu0 %v79
    %203 = vmatprep.subr.mxu0 0.0
    %204 = vmatpush1.msra.mxu0 %v80
    %205 = vmatprep.subr.mxu0 0.0
    %206 = vmatpush1.msra.mxu0 %v81
    %207 = vmatprep.subr.mxu0 0.0
    %208 = vmatpush1.msra.mxu0 %v82
    %209 = vmatprep.subr.mxu0 0.0
    %210 = vmatpush1.msra.mxu0 %v83
    %211 = vmatprep.subr.mxu0 0.0
    %212 = vmatpush1.msra.mxu0 %v84
    %213 = vmatprep.subr.mxu0 0.0
    %214 = vmatpush1.msra.mxu0 0.0
    %215 = vmatprep.subr.mxu0 0.0
    %216 = vmatpush1.msra.mxu0 0.0
    %217 = vmatprep.subr.mxu0 0.0
    %218 = vmatpush1.msra.mxu0 0.0
    %219 = vmatprep.subr.mxu0 0.0
    %220 = vmatpush1.msra.mxu0 0.0
    %221 = vmatprep.subr.mxu0 0.0
    %222 = vmatpush1.msra.mxu0 0.0
    %223 = vmatprep.subr.mxu0 0.0
    %224 = vmatpush1.msra.mxu0 0.0
    %225 = vmatprep.subr.mxu0 0.0
    %226 = vmatpush1.msra.mxu0 0.0
    %227 = vmatprep.subr.mxu0 0.0
    %228 = vmatpush1.msra.mxu0 0.0
    %229 = vmatprep.subr.mxu0 0.0
    %230 = vmatpush1.msra.mxu0 0.0
    %231 = vmatprep.subr.mxu0 0.0
    %232 = vmatpush1.msra.mxu0 0.0
    %233 = vmatprep.subr.mxu0 0.0
    %234 = vmatpush1.msra.mxu0 0.0
    %235 = vmatprep.subr.mxu0 0.0
    %236 = vmatpush1.msra.mxu0 0.0
    %237 = vmatprep.subr.mxu0 0.0
    %238 = vmatpush1.msra.mxu0 0.0
    %239 = vmatprep.subr.mxu0 0.0
    %240 = vmatpush1.msra.mxu0 0.0
    %241 = vmatprep.subr.mxu0 0.0
    %242 = vmatpush1.msra.mxu0 0.0
    %243 = vmatprep.subr.mxu0 0.0
    %244 = vmatpush1.msra.mxu0 0.0
    %245 = vmatprep.subr.mxu0 0.0
    %246 = vmatpush1.msra.mxu0 0.0
    %247 = vmatprep.subr.mxu0 0.0
    %248 = vmatpush1.msra.mxu0 0.0
    %249 = vmatprep.subr.mxu0 0.0
    %250 = vmatpush1.msra.mxu0 0.0
    %251 = vmatprep.subr.mxu0 0.0
    %252 = vmatpush1.msra.mxu0 0.0
    %253 = vmatprep.mubr.f32.mxu0 0.0
    %254 = vmatmul.mubr.f32.gmra.mrb[0].mxu0 %v94
    %v255 = vpop.f32.mrb[0].mxu0
    %v256 = vadd.f32 %v90, %v255
    %v257 = vpop.f32.mrb[0].mxu0
    %258 = vmatprep.mubr.f32.mxu0 0.0
    %259 = vmatmul.mubr.f32.gmra.mrb[0].mxu0 %v97
    %v260 = vpop.f32.mrb[0].mxu0
    %v261 = vadd.f32 %v90, %v260
    %v262 = vpop.f32.mrb[0].mxu0
    %263 = vmatprep.mubr.f32.mxu0 0.0
    %264 = vmatmul.mubr.f32.gmra.mrb[0].mxu0 %v100
    %v265 = vpop.f32.mrb[0].mxu0
    %v266 = vadd.f32 %v90, %v265
    %v267 = vpop.f32.mrb[0].mxu0
    %268 = vmatprep.mubr.f32.mxu0 0.0
    %269 = vmatmul.mubr.f32.gmra.mrb[0].mxu0 %v103
    %v270 = vpop.f32.mrb[0].mxu0
    %v271 = vadd.f32 %v90, %v270
    %v272 = vpop.f32.mrb[0].mxu0
    %273 = vmatprep.mubr.f32.mxu0 0.0
    %274 = vmatmul.mubr.f32.gmra.mrb[0].mxu0 %v106
    %v275 = vpop.f32.mrb[0].mxu0
    %v276 = vadd.f32 %v90, %v275
    %v277 = vpop.f32.mrb[0].mxu0
    %278 = vmatprep.mubr.f32.mxu0 0.0
    %279 = vmatmul.mubr.f32.gmra.mrb[0].mxu0 %v109
    %v280 = vpop.f32.mrb[0].mxu0
    %v281 = vadd.f32 %v90, %v280
    %v282 = vpop.f32.mrb[0].mxu0
    %283 = vmatprep.mubr.f32.mxu0 0.0
    %284 = vmatmul.mubr.f32.gmra.mrb[0].mxu0 %v112
    %v285 = vpop.f32.mrb[0].mxu0
    %v286 = vadd.f32 %v90, %v285
    %v287 = vpop.f32.mrb[0].mxu0
    %288 = vmatprep.mubr.f32.mxu0 0.0
    %289 = vmatmul.mubr.f32.gmra.mrb[0].mxu0 %v115
    %v290 = vpop.f32.mrb[0].mxu0
    %v291 = vadd.f32 %v90, %v290
    %v292 = vpop.f32.mrb[0].mxu0
    %293 = vmatprep.mubr.f32.mxu0 0.0
    %294 = vmatmul.mubr.f32.gmra.mrb[0].mxu0 %v118
    %v295 = vpop.f32.mrb[0].mxu0
    %v296 = vadd.f32 %v90, %v295
    %v297 = vpop.f32.mrb[0].mxu0
    %298 = vmatprep.mubr.f32.mxu0 0.0
    %299 = vmatmul.mubr.f32.gmra.mrb[0].mxu0 %v121
    %v300 = vpop.f32.mrb[0].mxu0
    %v301 = vadd.f32 %v90, %v300
    %v302 = vpop.f32.mrb[0].mxu0
    %303 = vmatprep.mubr.f32.mxu0 0.0
    %304 = vmatmul.mubr.f32.gmra.mrb[0].mxu0 %v124
    %v305 = vpop.f32.mrb[0].mxu0
    %v306 = vadd.f32 %v90, %v305
    %v307 = vpop.f32.mrb[0].mxu0
    %308 = vmatprep.mubr.f32.mxu0 0.0
    %309 = vmatmul.mubr.f32.gmra.mrb[0].mxu0 %v127
    %v310 = vpop.f32.mrb[0].mxu0
    %v311 = vadd.f32 %v90, %v310
    %v312 = vpop.f32.mrb[0].mxu0
    %313 = vmatprep.mubr.f32.mxu0 0.0
    %314 = vmatmul.mubr.f32.gmra.mrb[0].mxu0 %v130
    %v315 = vpop.f32.mrb[0].mxu0
    %v316 = vadd.f32 %v90, %v315
    %v317 = vpop.f32.mrb[0].mxu0
    %318 = vmatprep.mubr.f32.mxu0 0.0
    %319 = vmatmul.mubr.f32.gmra.mrb[0].mxu0 %v133
    %v320 = vpop.f32.mrb[0].mxu0
    %v321 = vadd.f32 %v90, %v320
    %v322 = vpop.f32.mrb[0].mxu0
    %323 = vmatprep.mubr.f32.mxu0 0.0
    %324 = vmatmul.mubr.f32.gmra.mrb[0].mxu0 %v136
    %v325 = vpop.f32.mrb[0].mxu0
    %v326 = vadd.f32 %v90, %v325
    %v327 = vpop.f32.mrb[0].mxu0
    %328 = vmatprep.mubr.f32.mxu0 0.0
    %329 = vmatmul.mubr.f32.gmra.mrb[0].mxu0 %v139
    %v330 = vpop.f32.mrb[0].mxu0
    %v331 = vadd.f32 %v90, %v330
    %v332 = vpop.f32.mrb[0].mxu0
    %333 = vmatprep.mubr.f32.mxu0 0.0
    %334 = vmatmul.mubr.f32.gmra.mrb[0].mxu0 %v142
    %v335 = vpop.f32.mrb[0].mxu0
    %v336 = vadd.f32 %v90, %v335
    %v337 = vpop.f32.mrb[0].mxu0
    %338 = vmatprep.mubr.f32.mxu0 0.0
    %339 = vmatmul.mubr.f32.gmra.mrb[0].mxu0 %v145
    %v340 = vpop.f32.mrb[0].mxu0
    %v341 = vadd.f32 %v90, %v340
    %v342 = vpop.f32.mrb[0].mxu0
    %343 = vmatprep.mubr.f32.mxu0 0.0
    %344 = vmatmul.mubr.f32.gmra.mrb[0].mxu0 %v148
    %v345 = vpop.f32.mrb[0].mxu0
    %v346 = vadd.f32 %v90, %v345
    %v347 = vpop.f32.mrb[0].mxu0
    %348 = vmatprep.mubr.f32.mxu0 0.0
    %349 = vmatmul.mubr.f32.gmra.mrb[0].mxu0 %v151
    %v350 = vpop.f32.mrb[0].mxu0
    %v351 = vadd.f32 %v90, %v350
    %v352 = vpop.f32.mrb[0].mxu0
    %353 = vmatprep.mubr.f32.mxu0 0.0
    %354 = vmatmul.mubr.f32.gmra.mrb[0].mxu0 %v154
    %v355 = vpop.f32.mrb[0].mxu0
    %v356 = vadd.f32 %v90, %v355
    %v357 = vpop.f32.mrb[0].mxu0
    %358 = vmatprep.mubr.f32.mxu0 0.0
    %359 = vmatmul.mubr.f32.gmra.mrb[0].mxu0 %v157
    %v360 = vpop.f32.mrb[0].mxu0
    %v361 = vadd.f32 %v90, %v360
    %v362 = vpop.f32.mrb[0].mxu0
    %363 = vmatprep.mubr.f32.mxu0 0.0
    %364 = vmatmul.mubr.f32.gmra.mrb[0].mxu0 %v160
    %v365 = vpop.f32.mrb[0].mxu0
    %v366 = vadd.f32 %v90, %v365
    %v367 = vpop.f32.mrb[0].mxu0
    %368 = vmatprep.mubr.f32.mxu0 0.0
    %369 = vmatmul.mubr.f32.gmra.mrb[0].mxu0 %v163
    %v370 = vpop.f32.mrb[0].mxu0
    %v371 = vadd.f32 %v90, %v370
    %v372 = vpop.f32.mrb[0].mxu0
    %373 = vmatprep.mubr.f32.mxu0 0.0
    %374 = vmatmul.mubr.f32.gmra.mrb[0].mxu0 %v166
    %v375 = vpop.f32.mrb[0].mxu0
    %v376 = vadd.f32 %v90, %v375
    %v377 = vpop.f32.mrb[0].mxu0
    %378 = vmatprep.mubr.f32.mxu0 0.0
    %379 = vmatmul.mubr.f32.gmra.mrb[0].mxu0 %v169
    %v380 = vpop.f32.mrb[0].mxu0
    %v381 = vadd.f32 %v90, %v380
    %v382 = vpop.f32.mrb[0].mxu0
    %383 = vmatprep.mubr.f32.mxu0 0.0
    %384 = vmatmul.mubr.f32.gmra.mrb[0].mxu0 %v172
    %v385 = vpop.f32.mrb[0].mxu0
    %v386 = vadd.f32 %v90, %v385
    %v387 = vpop.f32.mrb[0].mxu0
    %388 = vmatprep.mubr.f32.mxu0 0.0
    %389 = vmatmul.mubr.f32.gmra.mrb[0].mxu0 %v175
    %v390 = vpop.f32.mrb[0].mxu0
    %v391 = vadd.f32 %v90, %v390
    %v392 = vpop.f32.mrb[0].mxu0
    %393 = vmatprep.mubr.f32.mxu0 0.0
    %394 = vmatmul.mubr.f32.gmra.mrb[0].mxu0 %v178
    %v395 = vpop.f32.mrb[0].mxu0
    %v396 = vadd.f32 %v90, %v395
    %v397 = vpop.f32.mrb[0].mxu0
    %398 = vmatprep.mubr.f32.mxu0 0.0
    %399 = vmatmul.mubr.f32.gmra.mrb[0].mxu0 %v181
    %v400 = vpop.f32.mrb[0].mxu0
    %v401 = vadd.f32 %v90, %v400
    %v402 = vpop.f32.mrb[0].mxu0
    %403 = vmatprep.mubr.f32.mxu0 0.0
    %404 = vmatmul.mubr.f32.gmra.mrb[0].mxu0 %v184
    %v405 = vpop.f32.mrb[0].mxu0
    %v406 = vadd.f32 %v90, %v405
    %v407 = vpop.f32.mrb[0].mxu0
    %408 = vmatprep.mubr.f32.mxu0 0.0
    %409 = vmatmul.mubr.f32.gmra.mrb[0].mxu0 %v187
    %v410 = vpop.f32.mrb[0].mxu0
    %v411 = vadd.f32 %v90, %v410
    %v412 = vpop.f32.mrb[0].mxu0
    %413 = vdwg.mxu0
    %v414 = vld [vmem:[%s4] sm:$0x1]
    %v416 = vlaneseq
    %v417 = vshrl.u32 %v416, 7
    %v418 = vsub.s32 0, %v417
    %v419 = vrot.slane %v414, %v418
    %v421 = vmul.f32 %v256, %v419
    %v422 = vmul.f32 %v261, %v419
    %v423 = vmul.f32 %v266, %v419
    %v424 = vmul.f32 %v271, %v419
    %v425 = vmul.f32 %v276, %v419
    %v426 = vmul.f32 %v281, %v419
    %v427 = vmul.f32 %v286, %v419
    %v428 = vmul.f32 %v291, %v419
    %v429 = vmul.f32 %v296, %v419
    %v430 = vmul.f32 %v301, %v419
    %v431 = vmul.f32 %v306, %v419
    %v432 = vmul.f32 %v311, %v419
    %v433 = vmul.f32 %v316, %v419
    %v434 = vmul.f32 %v321, %v419
    %v435 = vmul.f32 %v326, %v419
    %v436 = vmul.f32 %v331, %v419
    %v437 = vmul.f32 %v336, %v419
    %v438 = vmul.f32 %v341, %v419
    %v439 = vmul.f32 %v346, %v419
    %v440 = vmul.f32 %v351, %v419
    %v441 = vmul.f32 %v356, %v419
    %v442 = vmul.f32 %v361, %v419
    %v443 = vmul.f32 %v366, %v419
    %v444 = vmul.f32 %v371, %v419
    %v445 = vmul.f32 %v376, %v419
    %v446 = vmul.f32 %v381, %v419
    %v447 = vmul.f32 %v386, %v419
    %v448 = vmul.f32 %v391, %v419
    %v449 = vmul.f32 %v396, %v419
    %v450 = vmul.f32 %v401, %v419
    %v451 = vmul.f32 %v406, %v419
    %v452 = vmul.f32 %v411, %v419
    %vm453 = vcmask 261120
    %v454 = vsel %vm453, %v421, 0.0
    %455 = vadd.xlane.f32.xlu0 %v454
    %v456 = vpop.xlane.xlu0 %455
    %v457 = vsel %vm453, %v422, 0.0
    %458 = vadd.xlane.f32.xlu0 %v457
    %v459 = vpop.xlane.xlu0 %458
    %v460 = vsel %vm453, %v423, 0.0
    %461 = vadd.xlane.f32.xlu0 %v460
    %v462 = vpop.xlane.xlu0 %461
    %v463 = vsel %vm453, %v424, 0.0
    %464 = vadd.xlane.f32.xlu0 %v463
    %v465 = vpop.xlane.xlu0 %464
    %v466 = vsel %vm453, %v425, 0.0
    %467 = vadd.xlane.f32.xlu0 %v466
    %v468 = vpop.xlane.xlu0 %467
    %v469 = vsel %vm453, %v426, 0.0
    %470 = vadd.xlane.f32.xlu0 %v469
    %v471 = vpop.xlane.xlu0 %470
    %v472 = vsel %vm453, %v427, 0.0
    %473 = vadd.xlane.f32.xlu0 %v472
    %v474 = vpop.xlane.xlu0 %473
    %v475 = vsel %vm453, %v428, 0.0
    %476 = vadd.xlane.f32.xlu0 %v475
    %v477 = vpop.xlane.xlu0 %476
    %v478 = vsel %vm453, %v429, 0.0
    %479 = vadd.xlane.f32.xlu0 %v478
    %v480 = vpop.xlane.xlu0 %479
    %v481 = vsel %vm453, %v430, 0.0
    %482 = vadd.xlane.f32.xlu0 %v481
    %v483 = vpop.xlane.xlu0 %482
    %v484 = vsel %vm453, %v431, 0.0
    %485 = vadd.xlane.f32.xlu0 %v484
    %v486 = vpop.xlane.xlu0 %485
    %v487 = vsel %vm453, %v432, 0.0
    %488 = vadd.xlane.f32.xlu0 %v487
    %v489 = vpop.xlane.xlu0 %488
    %v490 = vsel %vm453, %v433, 0.0
    %491 = vadd.xlane.f32.xlu0 %v490
    %v492 = vpop.xlane.xlu0 %491
    %v493 = vsel %vm453, %v434, 0.0
    %494 = vadd.xlane.f32.xlu0 %v493
    %v495 = vpop.xlane.xlu0 %494
    %v496 = vsel %vm453, %v435, 0.0
    %497 = vadd.xlane.f32.xlu0 %v496
    %v498 = vpop.xlane.xlu0 %497
    %v499 = vsel %vm453, %v436, 0.0
    %500 = vadd.xlane.f32.xlu0 %v499
    %v501 = vpop.xlane.xlu0 %500
    %v502 = vsel %vm453, %v437, 0.0
    %503 = vadd.xlane.f32.xlu0 %v502
    %v504 = vpop.xlane.xlu0 %503
    %v505 = vsel %vm453, %v438, 0.0
    %506 = vadd.xlane.f32.xlu0 %v505
    %v507 = vpop.xlane.xlu0 %506
    %v508 = vsel %vm453, %v439, 0.0
    %509 = vadd.xlane.f32.xlu0 %v508
    %v510 = vpop.xlane.xlu0 %509
    %v511 = vsel %vm453, %v440, 0.0
    %512 = vadd.xlane.f32.xlu0 %v511
    %v513 = vpop.xlane.xlu0 %512
    %v514 = vsel %vm453, %v441, 0.0
    %515 = vadd.xlane.f32.xlu0 %v514
    %v516 = vpop.xlane.xlu0 %515
    %v517 = vsel %vm453, %v442, 0.0
    %518 = vadd.xlane.f32.xlu0 %v517
    %v519 = vpop.xlane.xlu0 %518
    %v520 = vsel %vm453, %v443, 0.0
    %521 = vadd.xlane.f32.xlu0 %v520
    %v522 = vpop.xlane.xlu0 %521
    %v523 = vsel %vm453, %v444, 0.0
    %524 = vadd.xlane.f32.xlu0 %v523
    %v525 = vpop.xlane.xlu0 %524
    %v526 = vsel %vm453, %v445, 0.0
    %527 = vadd.xlane.f32.xlu0 %v526
    %v528 = vpop.xlane.xlu0 %527
    %v529 = vsel %vm453, %v446, 0.0
    %530 = vadd.xlane.f32.xlu0 %v529
    %v531 = vpop.xlane.xlu0 %530
    %v532 = vsel %vm453, %v447, 0.0
    %533 = vadd.xlane.f32.xlu0 %v532
    %v534 = vpop.xlane.xlu0 %533
    %v535 = vsel %vm453, %v448, 0.0
    %536 = vadd.xlane.f32.xlu0 %v535
    %v537 = vpop.xlane.xlu0 %536
    %v538 = vsel %vm453, %v449, 0.0
    %539 = vadd.xlane.f32.xlu0 %v538
    %v540 = vpop.xlane.xlu0 %539
    %v541 = vsel %vm453, %v450, 0.0
    %542 = vadd.xlane.f32.xlu0 %v541
    %v543 = vpop.xlane.xlu0 %542
    %v544 = vsel %vm453, %v451, 0.0
    %545 = vadd.xlane.f32.xlu0 %v544
    %v546 = vpop.xlane.xlu0 %545
    %v547 = vsel %vm453, %v452, 0.0
    %548 = vadd.xlane.f32.xlu0 %v547
    %v549 = vpop.xlane.xlu0 %548
    %v550 = vld [vmem:[#allocation2] sm:$0x1]
    %s551 = vtos %v550
    %v552 = vstv %s551
    %v553 = vadd.f32 %v456, %v552
    %v554 = vadd.f32 %v459, %v552
    %v555 = vadd.f32 %v462, %v552
    %v556 = vadd.f32 %v465, %v552
    %v557 = vadd.f32 %v468, %v552
    %v558 = vadd.f32 %v471, %v552
    %v559 = vadd.f32 %v474, %v552
    %v560 = vadd.f32 %v477, %v552
    %v561 = vadd.f32 %v480, %v552
    %v562 = vadd.f32 %v483, %v552
    %v563 = vadd.f32 %v486, %v552
    %v564 = vadd.f32 %v489, %v552
    %v565 = vadd.f32 %v492, %v552
    %v566 = vadd.f32 %v495, %v552
    %v567 = vadd.f32 %v498, %v552
    %v568 = vadd.f32 %v501, %v552
    %v569 = vadd.f32 %v504, %v552
    %v570 = vadd.f32 %v507, %v552
    %v571 = vadd.f32 %v510, %v552
    %v572 = vadd.f32 %v513, %v552
    %v573 = vadd.f32 %v516, %v552
    %v574 = vadd.f32 %v519, %v552
    %v575 = vadd.f32 %v522, %v552
    %v576 = vadd.f32 %v525, %v552
    %v577 = vadd.f32 %v528, %v552
    %v578 = vadd.f32 %v531, %v552
    %v579 = vadd.f32 %v534, %v552
    %v580 = vadd.f32 %v537, %v552
    %v581 = vadd.f32 %v540, %v552
    %v582 = vadd.f32 %v543, %v552
    %v583 = vadd.f32 %v546, %v552
    %v584 = vadd.f32 %v549, %v552
    %v585 = vtanh.pop %v553
    %v586 = vtanh.pop %v554
    %v587 = vtanh.pop %v555
    %v588 = vtanh.pop %v556
    %v589 = vtanh.pop %v557
    %v590 = vtanh.pop %v558
    %v591 = vtanh.pop %v559
    %v592 = vtanh.pop %v560
    %v593 = vtanh.pop %v561
    %v594 = vtanh.pop %v562
    %v595 = vtanh.pop %v563
    %v596 = vtanh.pop %v564
    %v597 = vtanh.pop %v565
    %v598 = vtanh.pop %v566
    %v599 = vtanh.pop %v567
    %v600 = vtanh.pop %v568
    %v601 = vtanh.pop %v569
    %v602 = vtanh.pop %v570
    %v603 = vtanh.pop %v571
    %v604 = vtanh.pop %v572
    %v605 = vtanh.pop %v573
    %v606 = vtanh.pop %v574
    %v607 = vtanh.pop %v575
    %v608 = vtanh.pop %v576
    %v609 = vtanh.pop %v577
    %v610 = vtanh.pop %v578
    %v611 = vtanh.pop %v579
    %v612 = vtanh.pop %v580
    %v613 = vtanh.pop %v581
    %v614 = vtanh.pop %v582
    %v615 = vtanh.pop %v583
    %v616 = vtanh.pop %v584
    %v617 = vmul.f32 %v585, 1.442695
    %v618 = vpow.pop %v617
    %v619 = vmul.f32 %v586, 1.442695
    %v620 = vpow.pop %v619
    %v621 = vmul.f32 %v587, 1.442695
    %v622 = vpow.pop %v621
    %v623 = vmul.f32 %v588, 1.442695
    %v624 = vpow.pop %v623
    %v625 = vmul.f32 %v589, 1.442695
    %v626 = vpow.pop %v625
    %v627 = vmul.f32 %v590, 1.442695
    %v628 = vpow.pop %v627
    %v629 = vmul.f32 %v591, 1.442695
    %v630 = vpow.pop %v629
    %v631 = vmul.f32 %v592, 1.442695
    %v632 = vpow.pop %v631
    %v633 = vmul.f32 %v593, 1.442695
    %v634 = vpow.pop %v633
    %v635 = vmul.f32 %v594, 1.442695
    %v636 = vpow.pop %v635
    %v637 = vmul.f32 %v595, 1.442695
    %v638 = vpow.pop %v637
    %v639 = vmul.f32 %v596, 1.442695
    %v640 = vpow.pop %v639
    %v641 = vmul.f32 %v597, 1.442695
    %v642 = vpow.pop %v641
    %v643 = vmul.f32 %v598, 1.442695
    %v644 = vpow.pop %v643
    %v645 = vmul.f32 %v599, 1.442695
    %v646 = vpow.pop %v645
    %v647 = vmul.f32 %v600, 1.442695
    %v648 = vpow.pop %v647
    %v649 = vmul.f32 %v601, 1.442695
    %v650 = vpow.pop %v649
    %v651 = vmul.f32 %v602, 1.442695
    %v652 = vpow.pop %v651
    %v653 = vmul.f32 %v603, 1.442695
    %v654 = vpow.pop %v653
    %v655 = vmul.f32 %v604, 1.442695
    %v656 = vpow.pop %v655
    %v657 = vmul.f32 %v605, 1.442695
    %v658 = vpow.pop %v657
    %v659 = vmul.f32 %v606, 1.442695
    %v660 = vpow.pop %v659
    %v661 = vmul.f32 %v607, 1.442695
    %v662 = vpow.pop %v661
    %v663 = vmul.f32 %v608, 1.442695
    %v664 = vpow.pop %v663
    %v665 = vmul.f32 %v609, 1.442695
    %v666 = vpow.pop %v665
    %v667 = vmul.f32 %v610, 1.442695
    %v668 = vpow.pop %v667
    %v669 = vmul.f32 %v611, 1.442695
    %v670 = vpow.pop %v669
    %v671 = vmul.f32 %v612, 1.442695
    %v672 = vpow.pop %v671
    %v673 = vmul.f32 %v613, 1.442695
    %v674 = vpow.pop %v673
    %v675 = vmul.f32 %v614, 1.442695
    %v676 = vpow.pop %v675
    %v677 = vmul.f32 %v615, 1.442695
    %v678 = vpow.pop %v677
    %v679 = vmul.f32 %v616, 1.442695
    %v680 = vpow.pop %v679
    %v681 = vld [vmem:[%s1] sm:$0xff]
    %v682 = vld [vmem:[%s1 + $0x8] sm:$0xff]
    %v685 = vlaneseq
    %v686 = vshrl.u32 %v685, 7
    %v687 = vsub.s32 0, %v686
    %v688 = vrot.slane %v681, %v687
    %690 = vbcast.lane.b32.xlu0 %v688, 256
    %v691 = vpop.permute.xlu0 %690
    %s693 = sor.u32 256, 8
    %694 = vbcast.lane.b32.xlu0 %v688, %s693
    %v695 = vpop.permute.xlu0 %694
    %v696 = vlaneseq
    %v697 = vshrl.u32 %v696, 7
    %v698 = vsub.s32 1, %v697
    %v699 = vrot.slane %v681, %v698
    %701 = vbcast.lane.b32.xlu0 %v699, 256
    %v702 = vpop.permute.xlu0 %701
    %s704 = sor.u32 256, 8
    %705 = vbcast.lane.b32.xlu0 %v699, %s704
    %v706 = vpop.permute.xlu0 %705
    %v707 = vlaneseq
    %v708 = vshrl.u32 %v707, 7
    %v709 = vsub.s32 2, %v708
    %v710 = vrot.slane %v681, %v709
    %712 = vbcast.lane.b32.xlu0 %v710, 256
    %v713 = vpop.permute.xlu0 %712
    %s715 = sor.u32 256, 8
    %716 = vbcast.lane.b32.xlu0 %v710, %s715
    %v717 = vpop.permute.xlu0 %716
    %v718 = vlaneseq
    %v719 = vshrl.u32 %v718, 7
    %v720 = vsub.s32 3, %v719
    %v721 = vrot.slane %v681, %v720
    %723 = vbcast.lane.b32.xlu0 %v721, 256
    %v724 = vpop.permute.xlu0 %723
    %s726 = sor.u32 256, 8
    %727 = vbcast.lane.b32.xlu0 %v721, %s726
    %v728 = vpop.permute.xlu0 %727
    %v729 = vlaneseq
    %v730 = vshrl.u32 %v729, 7
    %v731 = vsub.s32 4, %v730
    %v732 = vrot.slane %v681, %v731
    %734 = vbcast.lane.b32.xlu0 %v732, 256
    %v735 = vpop.permute.xlu0 %734
    %s737 = sor.u32 256, 8
    %738 = vbcast.lane.b32.xlu0 %v732, %s737
    %v739 = vpop.permute.xlu0 %738
    %v740 = vlaneseq
    %v741 = vshrl.u32 %v740, 7
    %v742 = vsub.s32 5, %v741
    %v743 = vrot.slane %v681, %v742
    %745 = vbcast.lane.b32.xlu0 %v743, 256
    %v746 = vpop.permute.xlu0 %745
    %s748 = sor.u32 256, 8
    %749 = vbcast.lane.b32.xlu0 %v743, %s748
    %v750 = vpop.permute.xlu0 %749
    %v751 = vlaneseq
    %v752 = vshrl.u32 %v751, 7
    %v753 = vsub.s32 6, %v752
    %v754 = vrot.slane %v681, %v753
    %756 = vbcast.lane.b32.xlu0 %v754, 256
    %v757 = vpop.permute.xlu0 %756
    %s759 = sor.u32 256, 8
    %760 = vbcast.lane.b32.xlu0 %v754, %s759
    %v761 = vpop.permute.xlu0 %760
    %v762 = vlaneseq
    %v763 = vshrl.u32 %v762, 7
    %v764 = vsub.s32 7, %v763
    %v765 = vrot.slane %v681, %v764
    %767 = vbcast.lane.b32.xlu0 %v765, 256
    %v768 = vpop.permute.xlu0 %767
    %s770 = sor.u32 256, 8
    %771 = vbcast.lane.b32.xlu0 %v765, %s770
    %v772 = vpop.permute.xlu0 %771
    %v773 = vlaneseq
    %v774 = vshrl.u32 %v773, 7
    %v775 = vsub.s32 0, %v774
    %v776 = vrot.slane %v682, %v775
    %778 = vbcast.lane.b32.xlu0 %v776, 256
    %v779 = vpop.permute.xlu0 %778
    %s781 = sor.u32 256, 8
    %782 = vbcast.lane.b32.xlu0 %v776, %s781
    %v783 = vpop.permute.xlu0 %782
    %v784 = vlaneseq
    %v785 = vshrl.u32 %v784, 7
    %v786 = vsub.s32 1, %v785
    %v787 = vrot.slane %v682, %v786
    %789 = vbcast.lane.b32.xlu0 %v787, 256
    %v790 = vpop.permute.xlu0 %789
    %s792 = sor.u32 256, 8
    %793 = vbcast.lane.b32.xlu0 %v787, %s792
    %v794 = vpop.permute.xlu0 %793
    %v795 = vlaneseq
    %v796 = vshrl.u32 %v795, 7
    %v797 = vsub.s32 2, %v796
    %v798 = vrot.slane %v682, %v797
    %800 = vbcast.lane.b32.xlu0 %v798, 256
    %v801 = vpop.permute.xlu0 %800
    %s803 = sor.u32 256, 8
    %804 = vbcast.lane.b32.xlu0 %v798, %s803
    %v805 = vpop.permute.xlu0 %804
    %v806 = vlaneseq
    %v807 = vshrl.u32 %v806, 7
    %v808 = vsub.s32 3, %v807
    %v809 = vrot.slane %v682, %v808
    %811 = vbcast.lane.b32.xlu0 %v809, 256
    %v812 = vpop.permute.xlu0 %811
    %s814 = sor.u32 256, 8
    %815 = vbcast.lane.b32.xlu0 %v809, %s814
    %v816 = vpop.permute.xlu0 %815
    %v817 = vlaneseq
    %v818 = vshrl.u32 %v817, 7
    %v819 = vsub.s32 4, %v818
    %v820 = vrot.slane %v682, %v819
    %822 = vbcast.lane.b32.xlu0 %v820, 256
    %v823 = vpop.permute.xlu0 %822
    %s825 = sor.u32 256, 8
    %826 = vbcast.lane.b32.xlu0 %v820, %s825
    %v827 = vpop.permute.xlu0 %826
    %v828 = vlaneseq
    %v829 = vshrl.u32 %v828, 7
    %v830 = vsub.s32 5, %v829
    %v831 = vrot.slane %v682, %v830
    %833 = vbcast.lane.b32.xlu0 %v831, 256
    %v834 = vpop.permute.xlu0 %833
    %s836 = sor.u32 256, 8
    %837 = vbcast.lane.b32.xlu0 %v831, %s836
    %v838 = vpop.permute.xlu0 %837
    %v839 = vlaneseq
    %v840 = vshrl.u32 %v839, 7
    %v841 = vsub.s32 6, %v840
    %v842 = vrot.slane %v682, %v841
    %844 = vbcast.lane.b32.xlu0 %v842, 256
    %v845 = vpop.permute.xlu0 %844
    %s847 = sor.u32 256, 8
    %848 = vbcast.lane.b32.xlu0 %v842, %s847
    %v849 = vpop.permute.xlu0 %848
    %v850 = vlaneseq
    %v851 = vshrl.u32 %v850, 7
    %v852 = vsub.s32 7, %v851
    %v853 = vrot.slane %v682, %v852
    %855 = vbcast.lane.b32.xlu0 %v853, 256
    %v856 = vpop.permute.xlu0 %855
    %s858 = sor.u32 256, 8
    %859 = vbcast.lane.b32.xlu0 %v853, %s858
    %v860 = vpop.permute.xlu0 %859
    %v893 = vmul.f32 %v618, %v691
    %v894 = vmul.f32 %v620, %v695
    %v895 = vmul.f32 %v622, %v702
    %v896 = vmul.f32 %v624, %v706
    %v897 = vmul.f32 %v626, %v713
    %v898 = vmul.f32 %v628, %v717
    %v899 = vmul.f32 %v630, %v724
    %v900 = vmul.f32 %v632, %v728
    %v901 = vmul.f32 %v634, %v735
    %v902 = vmul.f32 %v636, %v739
    %v903 = vmul.f32 %v638, %v746
    %v904 = vmul.f32 %v640, %v750
    %v905 = vmul.f32 %v642, %v757
    %v906 = vmul.f32 %v644, %v761
    %v907 = vmul.f32 %v646, %v768
    %v908 = vmul.f32 %v648, %v772
    %v909 = vmul.f32 %v650, %v779
    %v910 = vmul.f32 %v652, %v783
    %v911 = vmul.f32 %v654, %v790
    %v912 = vmul.f32 %v656, %v794
    %v913 = vmul.f32 %v658, %v801
    %v914 = vmul.f32 %v660, %v805
    %v915 = vmul.f32 %v662, %v812
    %v916 = vmul.f32 %v664, %v816
    %v917 = vmul.f32 %v666, %v823
    %v918 = vmul.f32 %v668, %v827
    %v919 = vmul.f32 %v670, %v834
    %v920 = vmul.f32 %v672, %v838
    %v921 = vmul.f32 %v674, %v845
    %v922 = vmul.f32 %v676, %v849
    %v923 = vmul.f32 %v678, %v856
    %v924 = vmul.f32 %v680, %v860
    %957 = vset.pattern.permute.xlu0 0
    %958 = vperm.xlu0 %957, %v893
    %v959 = vpop.permute.xlu0 %958
    %960 = vset.pattern.permute.xlu0 0
    %961 = vperm.xlu0 %960, %v894
    %v962 = vpop.permute.xlu0 %961
    %963 = vset.pattern.permute.xlu0 0
    %964 = vperm.xlu0 %963, %v895
    %v965 = vpop.permute.xlu0 %964
    %966 = vset.pattern.permute.xlu0 0
    %967 = vperm.xlu0 %966, %v896
    %v968 = vpop.permute.xlu0 %967
    %969 = vset.pattern.permute.xlu0 0
    %970 = vperm.xlu0 %969, %v897
    %v971 = vpop.permute.xlu0 %970
    %972 = vset.pattern.permute.xlu0 0
    %973 = vperm.xlu0 %972, %v898
    %v974 = vpop.permute.xlu0 %973
    %975 = vset.pattern.permute.xlu0 0
    %976 = vperm.xlu0 %975, %v899
    %v977 = vpop.permute.xlu0 %976
    %978 = vset.pattern.permute.xlu0 0
    %979 = vperm.xlu0 %978, %v900
    %v980 = vpop.permute.xlu0 %979
    %981 = vset.pattern.permute.xlu0 0
    %982 = vperm.xlu0 %981, %v901
    %v983 = vpop.permute.xlu0 %982
    %984 = vset.pattern.permute.xlu0 0
    %985 = vperm.xlu0 %984, %v902
    %v986 = vpop.permute.xlu0 %985
    %987 = vset.pattern.permute.xlu0 0
    %988 = vperm.xlu0 %987, %v903
    %v989 = vpop.permute.xlu0 %988
    %990 = vset.pattern.permute.xlu0 0
    %991 = vperm.xlu0 %990, %v904
    %v992 = vpop.permute.xlu0 %991
    %993 = vset.pattern.permute.xlu0 0
    %994 = vperm.xlu0 %993, %v905
    %v995 = vpop.permute.xlu0 %994
    %996 = vset.pattern.permute.xlu0 0
    %997 = vperm.xlu0 %996, %v906
    %v998 = vpop.permute.xlu0 %997
    %999 = vset.pattern.permute.xlu0 0
    %1000 = vperm.xlu0 %999, %v907
    %v1001 = vpop.permute.xlu0 %1000
    %1002 = vset.pattern.permute.xlu0 0
    %1003 = vperm.xlu0 %1002, %v908
    %v1004 = vpop.permute.xlu0 %1003
    %1005 = vset.pattern.permute.xlu0 0
    %1006 = vperm.xlu0 %1005, %v909
    %v1007 = vpop.permute.xlu0 %1006
    %1008 = vset.pattern.permute.xlu0 0
    %1009 = vperm.xlu0 %1008, %v910
    %v1010 = vpop.permute.xlu0 %1009
    %1011 = vset.pattern.permute.xlu0 0
    %1012 = vperm.xlu0 %1011, %v911
    %v1013 = vpop.permute.xlu0 %1012
    %1014 = vset.pattern.permute.xlu0 0
    %1015 = vperm.xlu0 %1014, %v912
    %v1016 = vpop.permute.xlu0 %1015
    %1017 = vset.pattern.permute.xlu0 0
    %1018 = vperm.xlu0 %1017, %v913
    %v1019 = vpop.permute.xlu0 %1018
    %1020 = vset.pattern.permute.xlu0 0
    %1021 = vperm.xlu0 %1020, %v914
    %v1022 = vpop.permute.xlu0 %1021
    %1023 = vset.pattern.permute.xlu0 0
    %1024 = vperm.xlu0 %1023, %v915
    %v1025 = vpop.permute.xlu0 %1024
    %1026 = vset.pattern.permute.xlu0 0
    %1027 = vperm.xlu0 %1026, %v916
    %v1028 = vpop.permute.xlu0 %1027
    %1029 = vset.pattern.permute.xlu0 0
    %1030 = vperm.xlu0 %1029, %v917
    %v1031 = vpop.permute.xlu0 %1030
    %1032 = vset.pattern.permute.xlu0 0
    %1033 = vperm.xlu0 %1032, %v918
    %v1034 = vpop.permute.xlu0 %1033
    %1035 = vset.pattern.permute.xlu0 0
    %1036 = vperm.xlu0 %1035, %v919
    %v1037 = vpop.permute.xlu0 %1036
    %1038 = vset.pattern.permute.xlu0 0
    %1039 = vperm.xlu0 %1038, %v920
    %v1040 = vpop.permute.xlu0 %1039
    %1041 = vset.pattern.permute.xlu0 0
    %1042 = vperm.xlu0 %1041, %v921
    %v1043 = vpop.permute.xlu0 %1042
    %1044 = vset.pattern.permute.xlu0 0
    %1045 = vperm.xlu0 %1044, %v922
    %v1046 = vpop.permute.xlu0 %1045
    %1047 = vset.pattern.permute.xlu0 0
    %1048 = vperm.xlu0 %1047, %v923
    %v1049 = vpop.permute.xlu0 %1048
    %1050 = vset.pattern.permute.xlu0 0
    %1051 = vperm.xlu0 %1050, %v924
    %v1052 = vpop.permute.xlu0 %1051
    %v1053 = vlaneseq
    %v1054 = vand.u32 %v1053, 127
    %v1055 = vlaneseq
    %v1056 = vshrl.u32 %v1055, 7
    %v1057 = vsub.s32 %v1054, %v1056
    %v1058 = vrot.slane %v959, %v1057
    %v1059 = vadd.s32 %v1054, 4294967288
    %v1060 = vlaneseq
    %v1061 = vshrl.u32 %v1060, 7
    %v1062 = vsub.s32 %v1059, %v1061
    %v1063 = vrot.slane %v962, %v1062
    %vm1064 = vcmask 130112
    %v1065 = vsel %vm1064, %v1063, %v1058
    %v1066 = vlaneseq
    %v1067 = vshrl.u32 %v1066, 7
    %v1068 = vsub.s32 %v1054, %v1067
    %v1069 = vrot.slane %v965, %v1068
    %v1070 = vlaneseq
    %v1071 = vshrl.u32 %v1070, 7
    %v1072 = vsub.s32 %v1059, %v1071
    %v1073 = vrot.slane %v968, %v1072
    %v1074 = vsel %vm1064, %v1073, %v1069
    %v1075 = vlaneseq
    %v1076 = vshrl.u32 %v1075, 7
    %v1077 = vsub.s32 %v1054, %v1076
    %v1078 = vrot.slane %v971, %v1077
    %v1079 = vlaneseq
    %v1080 = vshrl.u32 %v1079, 7
    %v1081 = vsub.s32 %v1059, %v1080
    %v1082 = vrot.slane %v974, %v1081
    %v1083 = vsel %vm1064, %v1082, %v1078
    %v1084 = vlaneseq
    %v1085 = vshrl.u32 %v1084, 7
    %v1086 = vsub.s32 %v1054, %v1085
    %v1087 = vrot.slane %v977, %v1086
    %v1088 = vlaneseq
    %v1089 = vshrl.u32 %v1088, 7
    %v1090 = vsub.s32 %v1059, %v1089
    %v1091 = vrot.slane %v980, %v1090
    %v1092 = vsel %vm1064, %v1091, %v1087
    %v1093 = vlaneseq
    %v1094 = vshrl.u32 %v1093, 7
    %v1095 = vsub.s32 %v1054, %v1094
    %v1096 = vrot.slane %v983, %v1095
    %v1097 = vlaneseq
    %v1098 = vshrl.u32 %v1097, 7
    %v1099 = vsub.s32 %v1059, %v1098
    %v1100 = vrot.slane %v986, %v1099
    %v1101 = vsel %vm1064, %v1100, %v1096
    %v1102 = vlaneseq
    %v1103 = vshrl.u32 %v1102, 7
    %v1104 = vsub.s32 %v1054, %v1103
    %v1105 = vrot.slane %v989, %v1104
    %v1106 = vlaneseq
    %v1107 = vshrl.u32 %v1106, 7
    %v1108 = vsub.s32 %v1059, %v1107
    %v1109 = vrot.slane %v992, %v1108
    %v1110 = vsel %vm1064, %v1109, %v1105
    %v1111 = vlaneseq
    %v1112 = vshrl.u32 %v1111, 7
    %v1113 = vsub.s32 %v1054, %v1112
    %v1114 = vrot.slane %v995, %v1113
    %v1115 = vlaneseq
    %v1116 = vshrl.u32 %v1115, 7
    %v1117 = vsub.s32 %v1059, %v1116
    %v1118 = vrot.slane %v998, %v1117
    %v1119 = vsel %vm1064, %v1118, %v1114
    %v1120 = vlaneseq
    %v1121 = vshrl.u32 %v1120, 7
    %v1122 = vsub.s32 %v1054, %v1121
    %v1123 = vrot.slane %v1001, %v1122
    %v1124 = vlaneseq
    %v1125 = vshrl.u32 %v1124, 7
    %v1126 = vsub.s32 %v1059, %v1125
    %v1127 = vrot.slane %v1004, %v1126
    %v1128 = vsel %vm1064, %v1127, %v1123
    %v1129 = vlaneseq
    %v1130 = vshrl.u32 %v1129, 7
    %v1131 = vsub.s32 %v1054, %v1130
    %v1132 = vrot.slane %v1007, %v1131
    %v1133 = vlaneseq
    %v1134 = vshrl.u32 %v1133, 7
    %v1135 = vsub.s32 %v1059, %v1134
    %v1136 = vrot.slane %v1010, %v1135
    %v1137 = vsel %vm1064, %v1136, %v1132
    %v1138 = vlaneseq
    %v1139 = vshrl.u32 %v1138, 7
    %v1140 = vsub.s32 %v1054, %v1139
    %v1141 = vrot.slane %v1013, %v1140
    %v1142 = vlaneseq
    %v1143 = vshrl.u32 %v1142, 7
    %v1144 = vsub.s32 %v1059, %v1143
    %v1145 = vrot.slane %v1016, %v1144
    %v1146 = vsel %vm1064, %v1145, %v1141
    %v1147 = vlaneseq
    %v1148 = vshrl.u32 %v1147, 7
    %v1149 = vsub.s32 %v1054, %v1148
    %v1150 = vrot.slane %v1019, %v1149
    %v1151 = vlaneseq
    %v1152 = vshrl.u32 %v1151, 7
    %v1153 = vsub.s32 %v1059, %v1152
    %v1154 = vrot.slane %v1022, %v1153
    %v1155 = vsel %vm1064, %v1154, %v1150
    %v1156 = vlaneseq
    %v1157 = vshrl.u32 %v1156, 7
    %v1158 = vsub.s32 %v1054, %v1157
    %v1159 = vrot.slane %v1025, %v1158
    %v1160 = vlaneseq
    %v1161 = vshrl.u32 %v1160, 7
    %v1162 = vsub.s32 %v1059, %v1161
    %v1163 = vrot.slane %v1028, %v1162
    %v1164 = vsel %vm1064, %v1163, %v1159
    %v1165 = vlaneseq
    %v1166 = vshrl.u32 %v1165, 7
    %v1167 = vsub.s32 %v1054, %v1166
    %v1168 = vrot.slane %v1031, %v1167
    %v1169 = vlaneseq
    %v1170 = vshrl.u32 %v1169, 7
    %v1171 = vsub.s32 %v1059, %v1170
    %v1172 = vrot.slane %v1034, %v1171
    %v1173 = vsel %vm1064, %v1172, %v1168
    %v1174 = vlaneseq
    %v1175 = vshrl.u32 %v1174, 7
    %v1176 = vsub.s32 %v1054, %v1175
    %v1177 = vrot.slane %v1037, %v1176
    %v1178 = vlaneseq
    %v1179 = vshrl.u32 %v1178, 7
    %v1180 = vsub.s32 %v1059, %v1179
    %v1181 = vrot.slane %v1040, %v1180
    %v1182 = vsel %vm1064, %v1181, %v1177
    %v1183 = vlaneseq
    %v1184 = vshrl.u32 %v1183, 7
    %v1185 = vsub.s32 %v1054, %v1184
    %v1186 = vrot.slane %v1043, %v1185
    %v1187 = vlaneseq
    %v1188 = vshrl.u32 %v1187, 7
    %v1189 = vsub.s32 %v1059, %v1188
    %v1190 = vrot.slane %v1046, %v1189
    %v1191 = vsel %vm1064, %v1190, %v1186
    %v1192 = vlaneseq
    %v1193 = vshrl.u32 %v1192, 7
    %v1194 = vsub.s32 %v1054, %v1193
    %v1195 = vrot.slane %v1049, %v1194
    %v1196 = vlaneseq
    %v1197 = vshrl.u32 %v1196, 7
    %v1198 = vsub.s32 %v1059, %v1197
    %v1199 = vrot.slane %v1052, %v1198
    %v1200 = vsel %vm1064, %v1199, %v1195
    %vm1201 = vcmask 1041409
    %v1202 = vsel %vm1201, %v1074, %v1065
    %vm1203 = vcmask 1042434
    %v1204 = vsel %vm1203, %v1083, %v1202
    %vm1205 = vcmask 1043459
    %v1206 = vsel %vm1205, %v1092, %v1204
    %vm1207 = vcmask 1044484
    %v1208 = vsel %vm1207, %v1101, %v1206
    %vm1209 = vcmask 1045509
    %v1210 = vsel %vm1209, %v1110, %v1208
    %vm1211 = vcmask 1046534
    %v1212 = vsel %vm1211, %v1119, %v1210
    %vm1213 = vcmask 1047559
    %v1214 = vsel %vm1213, %v1128, %v1212
    %v1215 = vsel %vm1201, %v1146, %v1137
    %v1216 = vsel %vm1203, %v1155, %v1215
    %v1217 = vsel %vm1205, %v1164, %v1216
    %v1218 = vsel %vm1207, %v1173, %v1217
    %v1219 = vsel %vm1209, %v1182, %v1218
    %v1220 = vsel %vm1211, %v1191, %v1219
    %v1221 = vsel %vm1213, %v1200, %v1220
    %vm1224 = vcmask 130048
    %v1225 = vsel %vm1224, %v1214, 0.0
    %1226 = vadd.xlane.f32.xlu0 %v1225
    %v1227 = vpop.xlane.xlu0 %1226
    %v1228 = vsel %vm1224, %v1221, 0.0
    %1229 = vadd.xlane.f32.xlu0 %v1228
    %v1230 = vpop.xlane.xlu0 %1229
    %v1231 = vadd.f32 %v1227, 1e-06
    %v1232 = vadd.f32 %v1230, 1e-06
    %v1235 = vlaneseq
    %v1236 = vshrl.u32 %v1235, 7
    %v1237 = vsub.s32 0, %v1236
    %v1238 = vrot.slane %v1231, %v1237
    %v1239 = vlaneseq
    %v1240 = vshrl.u32 %v1239, 7
    %v1241 = vsub.s32 1, %v1240
    %v1242 = vrot.slane %v1231, %v1241
    %v1243 = vlaneseq
    %v1244 = vshrl.u32 %v1243, 7
    %v1245 = vsub.s32 2, %v1244
    %v1246 = vrot.slane %v1231, %v1245
    %v1247 = vlaneseq
    %v1248 = vshrl.u32 %v1247, 7
    %v1249 = vsub.s32 3, %v1248
    %v1250 = vrot.slane %v1231, %v1249
    %v1251 = vlaneseq
    %v1252 = vshrl.u32 %v1251, 7
    %v1253 = vsub.s32 4, %v1252
    %v1254 = vrot.slane %v1231, %v1253
    %v1255 = vlaneseq
    %v1256 = vshrl.u32 %v1255, 7
    %v1257 = vsub.s32 5, %v1256
    %v1258 = vrot.slane %v1231, %v1257
    %v1259 = vlaneseq
    %v1260 = vshrl.u32 %v1259, 7
    %v1261 = vsub.s32 6, %v1260
    %v1262 = vrot.slane %v1231, %v1261
    %v1263 = vlaneseq
    %v1264 = vshrl.u32 %v1263, 7
    %v1265 = vsub.s32 7, %v1264
    %v1266 = vrot.slane %v1231, %v1265
    %v1267 = vlaneseq
    %v1268 = vshrl.u32 %v1267, 7
    %v1269 = vsub.s32 0, %v1268
    %v1270 = vrot.slane %v1232, %v1269
    %v1271 = vlaneseq
    %v1272 = vshrl.u32 %v1271, 7
    %v1273 = vsub.s32 1, %v1272
    %v1274 = vrot.slane %v1232, %v1273
    %v1275 = vlaneseq
    %v1276 = vshrl.u32 %v1275, 7
    %v1277 = vsub.s32 2, %v1276
    %v1278 = vrot.slane %v1232, %v1277
    %v1279 = vlaneseq
    %v1280 = vshrl.u32 %v1279, 7
    %v1281 = vsub.s32 3, %v1280
    %v1282 = vrot.slane %v1232, %v1281
    %v1283 = vlaneseq
    %v1284 = vshrl.u32 %v1283, 7
    %v1285 = vsub.s32 4, %v1284
    %v1286 = vrot.slane %v1232, %v1285
    %v1287 = vlaneseq
    %v1288 = vshrl.u32 %v1287, 7
    %v1289 = vsub.s32 5, %v1288
    %v1290 = vrot.slane %v1232, %v1289
    %v1291 = vlaneseq
    %v1292 = vshrl.u32 %v1291, 7
    %v1293 = vsub.s32 6, %v1292
    %v1294 = vrot.slane %v1232, %v1293
    %v1295 = vlaneseq
    %v1296 = vshrl.u32 %v1295, 7
    %v1297 = vsub.s32 7, %v1296
    %v1298 = vrot.slane %v1232, %v1297
    %v1315 = vrcp.pop %v1238
    %v1316 = vmul.f32 %v893, %v1315
    %v1317 = vmul.f32 %v894, %v1315
    %v1318 = vrcp.pop %v1242
    %v1319 = vmul.f32 %v895, %v1318
    %v1320 = vmul.f32 %v896, %v1318
    %v1321 = vrcp.pop %v1246
    %v1322 = vmul.f32 %v897, %v1321
    %v1323 = vmul.f32 %v898, %v1321
    %v1324 = vrcp.pop %v1250
    %v1325 = vmul.f32 %v899, %v1324
    %v1326 = vmul.f32 %v900, %v1324
    %v1327 = vrcp.pop %v1254
    %v1328 = vmul.f32 %v901, %v1327
    %v1329 = vmul.f32 %v902, %v1327
    %v1330 = vrcp.pop %v1258
    %v1331 = vmul.f32 %v903, %v1330
    %v1332 = vmul.f32 %v904, %v1330
    %v1333 = vrcp.pop %v1262
    %v1334 = vmul.f32 %v905, %v1333
    %v1335 = vmul.f32 %v906, %v1333
    %v1336 = vrcp.pop %v1266
    %v1337 = vmul.f32 %v907, %v1336
    %v1338 = vmul.f32 %v908, %v1336
    %v1339 = vrcp.pop %v1270
    %v1340 = vmul.f32 %v909, %v1339
    %v1341 = vmul.f32 %v910, %v1339
    %v1342 = vrcp.pop %v1274
    %v1343 = vmul.f32 %v911, %v1342
    %v1344 = vmul.f32 %v912, %v1342
    %v1345 = vrcp.pop %v1278
    %v1346 = vmul.f32 %v913, %v1345
    %v1347 = vmul.f32 %v914, %v1345
    %v1348 = vrcp.pop %v1282
    %v1349 = vmul.f32 %v915, %v1348
    %v1350 = vmul.f32 %v916, %v1348
    %v1351 = vrcp.pop %v1286
    %v1352 = vmul.f32 %v917, %v1351
    %v1353 = vmul.f32 %v918, %v1351
    %v1354 = vrcp.pop %v1290
    %v1355 = vmul.f32 %v919, %v1354
    %v1356 = vmul.f32 %v920, %v1354
    %v1357 = vrcp.pop %v1294
    %v1358 = vmul.f32 %v921, %v1357
    %v1359 = vmul.f32 %v922, %v1357
    %v1360 = vrcp.pop %v1298
    %v1361 = vmul.f32 %v923, %v1360
    %v1362 = vmul.f32 %v924, %v1360
    %1364 = vset.pattern.permute.xlu0 0
    %1365 = vperm.xlu0 %1364, %v1316
    %v1366 = vpop.permute.xlu0 %1365
    %1369 = vset.pattern.permute.xlu0 0
    %1370 = vperm.xlu0 %1369, %v1317
    %v1371 = vpop.permute.xlu0 %1370
    %1374 = vset.pattern.permute.xlu0 0
    %1375 = vperm.xlu0 %1374, %v1319
    %v1376 = vpop.permute.xlu0 %1375
    %1379 = vset.pattern.permute.xlu0 0
    %1380 = vperm.xlu0 %1379, %v1320
    %v1381 = vpop.permute.xlu0 %1380
    %1384 = vset.pattern.permute.xlu0 0
    %1385 = vperm.xlu0 %1384, %v1322
    %v1386 = vpop.permute.xlu0 %1385
    %1389 = vset.pattern.permute.xlu0 0
    %1390 = vperm.xlu0 %1389, %v1323
    %v1391 = vpop.permute.xlu0 %1390
    %1394 = vset.pattern.permute.xlu0 0
    %1395 = vperm.xlu0 %1394, %v1325
    %v1396 = vpop.permute.xlu0 %1395
    %1399 = vset.pattern.permute.xlu0 0
    %1400 = vperm.xlu0 %1399, %v1326
    %v1401 = vpop.permute.xlu0 %1400
    %1404 = vset.pattern.permute.xlu0 0
    %1405 = vperm.xlu0 %1404, %v1328
    %v1406 = vpop.permute.xlu0 %1405
    %1409 = vset.pattern.permute.xlu0 0
    %1410 = vperm.xlu0 %1409, %v1329
    %v1411 = vpop.permute.xlu0 %1410
    %1414 = vset.pattern.permute.xlu0 0
    %1415 = vperm.xlu0 %1414, %v1331
    %v1416 = vpop.permute.xlu0 %1415
    %1419 = vset.pattern.permute.xlu0 0
    %1420 = vperm.xlu0 %1419, %v1332
    %v1421 = vpop.permute.xlu0 %1420
    %1424 = vset.pattern.permute.xlu0 0
    %1425 = vperm.xlu0 %1424, %v1334
    %v1426 = vpop.permute.xlu0 %1425
    %1429 = vset.pattern.permute.xlu0 0
    %1430 = vperm.xlu0 %1429, %v1335
    %v1431 = vpop.permute.xlu0 %1430
    %1434 = vset.pattern.permute.xlu0 0
    %1435 = vperm.xlu0 %1434, %v1337
    %v1436 = vpop.permute.xlu0 %1435
    %1439 = vset.pattern.permute.xlu0 0
    %1440 = vperm.xlu0 %1439, %v1338
    %v1441 = vpop.permute.xlu0 %1440
    %1444 = vset.pattern.permute.xlu0 0
    %1445 = vperm.xlu0 %1444, %v1340
    %v1446 = vpop.permute.xlu0 %1445
    %1449 = vset.pattern.permute.xlu0 0
    %1450 = vperm.xlu0 %1449, %v1341
    %v1451 = vpop.permute.xlu0 %1450
    %1454 = vset.pattern.permute.xlu0 0
    %1455 = vperm.xlu0 %1454, %v1343
    %v1456 = vpop.permute.xlu0 %1455
    %1459 = vset.pattern.permute.xlu0 0
    %1460 = vperm.xlu0 %1459, %v1344
    %v1461 = vpop.permute.xlu0 %1460
    %1464 = vset.pattern.permute.xlu0 0
    %1465 = vperm.xlu0 %1464, %v1346
    %v1466 = vpop.permute.xlu0 %1465
    %1469 = vset.pattern.permute.xlu0 0
    %1470 = vperm.xlu0 %1469, %v1347
    %v1471 = vpop.permute.xlu0 %1470
    %1474 = vset.pattern.permute.xlu0 0
    %1475 = vperm.xlu0 %1474, %v1349
    %v1476 = vpop.permute.xlu0 %1475
    %1479 = vset.pattern.permute.xlu0 0
    %1480 = vperm.xlu0 %1479, %v1350
    %v1481 = vpop.permute.xlu0 %1480
    %1484 = vset.pattern.permute.xlu0 0
    %1485 = vperm.xlu0 %1484, %v1352
    %v1486 = vpop.permute.xlu0 %1485
    %1489 = vset.pattern.permute.xlu0 0
    %1490 = vperm.xlu0 %1489, %v1353
    %v1491 = vpop.permute.xlu0 %1490
    %1494 = vset.pattern.permute.xlu0 0
    %1495 = vperm.xlu0 %1494, %v1355
    %v1496 = vpop.permute.xlu0 %1495
    %1499 = vset.pattern.permute.xlu0 0
    %1500 = vperm.xlu0 %1499, %v1356
    %v1501 = vpop.permute.xlu0 %1500
    %1504 = vset.pattern.permute.xlu0 0
    %1505 = vperm.xlu0 %1504, %v1358
    %v1506 = vpop.permute.xlu0 %1505
    %1509 = vset.pattern.permute.xlu0 0
    %1510 = vperm.xlu0 %1509, %v1359
    %v1511 = vpop.permute.xlu0 %1510
    %1514 = vset.pattern.permute.xlu0 0
    %1515 = vperm.xlu0 %1514, %v1361
    %v1516 = vpop.permute.xlu0 %1515
    %1519 = vset.pattern.permute.xlu0 0
    %1520 = vperm.xlu0 %1519, %v1362
    %v1521 = vpop.permute.xlu0 %1520
    %v1523 = vmul.f32 %v1366, %v256
    %v1524 = vmul.f32 %v1371, %v261
    %v1525 = vmul.f32 %v1376, %v266
    %v1526 = vmul.f32 %v1381, %v271
    %v1527 = vmul.f32 %v1386, %v276
    %v1528 = vmul.f32 %v1391, %v281
    %v1529 = vmul.f32 %v1396, %v286
    %v1530 = vmul.f32 %v1401, %v291
    %v1531 = vmul.f32 %v1406, %v296
    %v1532 = vmul.f32 %v1411, %v301
    %v1533 = vmul.f32 %v1416, %v306
    %v1534 = vmul.f32 %v1421, %v311
    %v1535 = vmul.f32 %v1426, %v316
    %v1536 = vmul.f32 %v1431, %v321
    %v1537 = vmul.f32 %v1436, %v326
    %v1538 = vmul.f32 %v1441, %v331
    %v1539 = vmul.f32 %v1446, %v336
    %v1540 = vmul.f32 %v1451, %v341
    %v1541 = vmul.f32 %v1456, %v346
    %v1542 = vmul.f32 %v1461, %v351
    %v1543 = vmul.f32 %v1466, %v356
    %v1544 = vmul.f32 %v1471, %v361
    %v1545 = vmul.f32 %v1476, %v366
    %v1546 = vmul.f32 %v1481, %v371
    %v1547 = vmul.f32 %v1486, %v376
    %v1548 = vmul.f32 %v1491, %v381
    %v1549 = vmul.f32 %v1496, %v386
    %v1550 = vmul.f32 %v1501, %v391
    %v1551 = vmul.f32 %v1506, %v396
    %v1552 = vmul.f32 %v1511, %v401
    %v1553 = vmul.f32 %v1516, %v406
    %v1554 = vmul.f32 %v1521, %v411
    %v1555 = vsel %vm453, %v1523, 0.0
    %v1556 = vsel %vm453, %v1524, 0.0
    %v1557 = vadd.f32 %v1555, %v1556
    %v1558 = vrot.slane %v1557, 4
    %v1559 = vadd.f32 %v1557, %v1558
    %v1560 = vrot.slane %v1559, 2
    %v1561 = vadd.f32 %v1559, %v1560
    %v1562 = vrot.slane %v1561, 1
    %v1563 = vadd.f32 %v1561, %v1562
    %v1564 = vsel %vm453, %v1525, 0.0
    %v1565 = vsel %vm453, %v1526, 0.0
    %v1566 = vadd.f32 %v1564, %v1565
    %v1567 = vrot.slane %v1566, 4
    %v1568 = vadd.f32 %v1566, %v1567
    %v1569 = vrot.slane %v1568, 2
    %v1570 = vadd.f32 %v1568, %v1569
    %v1571 = vrot.slane %v1570, 1
    %v1572 = vadd.f32 %v1570, %v1571
    %v1573 = vsel %vm453, %v1527, 0.0
    %v1574 = vsel %vm453, %v1528, 0.0
    %v1575 = vadd.f32 %v1573, %v1574
    %v1576 = vrot.slane %v1575, 4
    %v1577 = vadd.f32 %v1575, %v1576
    %v1578 = vrot.slane %v1577, 2
    %v1579 = vadd.f32 %v1577, %v1578
    %v1580 = vrot.slane %v1579, 1
    %v1581 = vadd.f32 %v1579, %v1580
    %v1582 = vsel %vm453, %v1529, 0.0
    %v1583 = vsel %vm453, %v1530, 0.0
    %v1584 = vadd.f32 %v1582, %v1583
    %v1585 = vrot.slane %v1584, 4
    %v1586 = vadd.f32 %v1584, %v1585
    %v1587 = vrot.slane %v1586, 2
    %v1588 = vadd.f32 %v1586, %v1587
    %v1589 = vrot.slane %v1588, 1
    %v1590 = vadd.f32 %v1588, %v1589
    %v1591 = vsel %vm453, %v1531, 0.0
    %v1592 = vsel %vm453, %v1532, 0.0
    %v1593 = vadd.f32 %v1591, %v1592
    %v1594 = vrot.slane %v1593, 4
    %v1595 = vadd.f32 %v1593, %v1594
    %v1596 = vrot.slane %v1595, 2
    %v1597 = vadd.f32 %v1595, %v1596
    %v1598 = vrot.slane %v1597, 1
    %v1599 = vadd.f32 %v1597, %v1598
    %v1600 = vsel %vm453, %v1533, 0.0
    %v1601 = vsel %vm453, %v1534, 0.0
    %v1602 = vadd.f32 %v1600, %v1601
    %v1603 = vrot.slane %v1602, 4
    %v1604 = vadd.f32 %v1602, %v1603
    %v1605 = vrot.slane %v1604, 2
    %v1606 = vadd.f32 %v1604, %v1605
    %v1607 = vrot.slane %v1606, 1
    %v1608 = vadd.f32 %v1606, %v1607
    %v1609 = vsel %vm453, %v1535, 0.0
    %v1610 = vsel %vm453, %v1536, 0.0
    %v1611 = vadd.f32 %v1609, %v1610
    %v1612 = vrot.slane %v1611, 4
    %v1613 = vadd.f32 %v1611, %v1612
    %v1614 = vrot.slane %v1613, 2
    %v1615 = vadd.f32 %v1613, %v1614
    %v1616 = vrot.slane %v1615, 1
    %v1617 = vadd.f32 %v1615, %v1616
    %v1618 = vsel %vm453, %v1537, 0.0
    %v1619 = vsel %vm453, %v1538, 0.0
    %v1620 = vadd.f32 %v1618, %v1619
    %v1621 = vrot.slane %v1620, 4
    %v1622 = vadd.f32 %v1620, %v1621
    %v1623 = vrot.slane %v1622, 2
    %v1624 = vadd.f32 %v1622, %v1623
    %v1625 = vrot.slane %v1624, 1
    %v1626 = vadd.f32 %v1624, %v1625
    %v1627 = vsel %vm453, %v1539, 0.0
    %v1628 = vsel %vm453, %v1540, 0.0
    %v1629 = vadd.f32 %v1627, %v1628
    %v1630 = vrot.slane %v1629, 4
    %v1631 = vadd.f32 %v1629, %v1630
    %v1632 = vrot.slane %v1631, 2
    %v1633 = vadd.f32 %v1631, %v1632
    %v1634 = vrot.slane %v1633, 1
    %v1635 = vadd.f32 %v1633, %v1634
    %v1636 = vsel %vm453, %v1541, 0.0
    %v1637 = vsel %vm453, %v1542, 0.0
    %v1638 = vadd.f32 %v1636, %v1637
    %v1639 = vrot.slane %v1638, 4
    %v1640 = vadd.f32 %v1638, %v1639
    %v1641 = vrot.slane %v1640, 2
    %v1642 = vadd.f32 %v1640, %v1641
    %v1643 = vrot.slane %v1642, 1
    %v1644 = vadd.f32 %v1642, %v1643
    %v1645 = vsel %vm453, %v1543, 0.0
    %v1646 = vsel %vm453, %v1544, 0.0
    %v1647 = vadd.f32 %v1645, %v1646
    %v1648 = vrot.slane %v1647, 4
    %v1649 = vadd.f32 %v1647, %v1648
    %v1650 = vrot.slane %v1649, 2
    %v1651 = vadd.f32 %v1649, %v1650
    %v1652 = vrot.slane %v1651, 1
    %v1653 = vadd.f32 %v1651, %v1652
    %v1654 = vsel %vm453, %v1545, 0.0
    %v1655 = vsel %vm453, %v1546, 0.0
    %v1656 = vadd.f32 %v1654, %v1655
    %v1657 = vrot.slane %v1656, 4
    %v1658 = vadd.f32 %v1656, %v1657
    %v1659 = vrot.slane %v1658, 2
    %v1660 = vadd.f32 %v1658, %v1659
    %v1661 = vrot.slane %v1660, 1
    %v1662 = vadd.f32 %v1660, %v1661
    %v1663 = vsel %vm453, %v1547, 0.0
    %v1664 = vsel %vm453, %v1548, 0.0
    %v1665 = vadd.f32 %v1663, %v1664
    %v1666 = vrot.slane %v1665, 4
    %v1667 = vadd.f32 %v1665, %v1666
    %v1668 = vrot.slane %v1667, 2
    %v1669 = vadd.f32 %v1667, %v1668
    %v1670 = vrot.slane %v1669, 1
    %v1671 = vadd.f32 %v1669, %v1670
    %v1672 = vsel %vm453, %v1549, 0.0
    %v1673 = vsel %vm453, %v1550, 0.0
    %v1674 = vadd.f32 %v1672, %v1673
    %v1675 = vrot.slane %v1674, 4
    %v1676 = vadd.f32 %v1674, %v1675
    %v1677 = vrot.slane %v1676, 2
    %v1678 = vadd.f32 %v1676, %v1677
    %v1679 = vrot.slane %v1678, 1
    %v1680 = vadd.f32 %v1678, %v1679
    %v1681 = vsel %vm453, %v1551, 0.0
    %v1682 = vsel %vm453, %v1552, 0.0
    %v1683 = vadd.f32 %v1681, %v1682
    %v1684 = vrot.slane %v1683, 4
    %v1685 = vadd.f32 %v1683, %v1684
    %v1686 = vrot.slane %v1685, 2
    %v1687 = vadd.f32 %v1685, %v1686
    %v1688 = vrot.slane %v1687, 1
    %v1689 = vadd.f32 %v1687, %v1688
    %v1690 = vsel %vm453, %v1553, 0.0
    %v1691 = vsel %vm453, %v1554, 0.0
    %v1692 = vadd.f32 %v1690, %v1691
    %v1693 = vrot.slane %v1692, 4
    %v1694 = vadd.f32 %v1692, %v1693
    %v1695 = vrot.slane %v1694, 2
    %v1696 = vadd.f32 %v1694, %v1695
    %v1697 = vrot.slane %v1696, 1
    %v1698 = vadd.f32 %v1696, %v1697
    %v1699 = vld [vmem:[%s7] sm:$0xff]
    %v1700 = vld [vmem:[%s7 + $0x8] sm:$0xff]
    %v1701 = vld [vmem:[%s7 + $0x10] sm:$0xff]
    %v1702 = vld [vmem:[%s7 + $0x18] sm:$0xff]
    %v1703 = vld [vmem:[%s9] sm:$0x1]
    %v1705 = vlaneseq
    %v1706 = vshrl.u32 %v1705, 7
    %v1707 = vsub.s32 0, %v1706
    %v1708 = vrot.slane %v1703, %v1707
    %v1726 = vsel %vm1201, %v1572, %v1563
    %v1727 = vsel %vm1203, %v1581, %v1726
    %v1728 = vsel %vm1205, %v1590, %v1727
    %v1729 = vsel %vm1207, %v1599, %v1728
    %v1730 = vsel %vm1209, %v1608, %v1729
    %v1731 = vsel %vm1211, %v1617, %v1730
    %v1732 = vsel %vm1213, %v1626, %v1731
    %v1733 = vsel %vm1201, %v1644, %v1635
    %v1734 = vsel %vm1203, %v1653, %v1733
    %v1735 = vsel %vm1205, %v1662, %v1734
    %v1736 = vsel %vm1207, %v1671, %v1735
    %v1737 = vsel %vm1209, %v1680, %v1736
    %v1738 = vsel %vm1211, %v1689, %v1737
    %v1739 = vsel %vm1213, %v1698, %v1738
    %v1740 = vsel %vm453, %v1732, 0
    %v1742 = vsel %vm453, %v1739, 0
    %1744 = vmatprep.subr.mxu0 0.0
    %1745 = vmatpush1.msra.mxu0 %v1699
    %1746 = vmatprep.subr.mxu0 0.0
    %1747 = vmatpush1.msra.mxu0 %v1700
    %1748 = vmatprep.subr.mxu0 0.0
    %1749 = vmatpush1.msra.mxu0 %v1701
    %1750 = vmatprep.subr.mxu0 0.0
    %1751 = vmatpush1.msra.mxu0 %v1702
    %1752 = vmatprep.subr.mxu0 0.0
    %1753 = vmatpush1.msra.mxu0 0.0
    %1754 = vmatprep.subr.mxu0 0.0
    %1755 = vmatpush1.msra.mxu0 0.0
    %1756 = vmatprep.subr.mxu0 0.0
    %1757 = vmatpush1.msra.mxu0 0.0
    %1758 = vmatprep.subr.mxu0 0.0
    %1759 = vmatpush1.msra.mxu0 0.0
    %1760 = vmatprep.subr.mxu0 0.0
    %1761 = vmatpush1.msra.mxu0 0.0
    %1762 = vmatprep.subr.mxu0 0.0
    %1763 = vmatpush1.msra.mxu0 0.0
    %1764 = vmatprep.subr.mxu0 0.0
    %1765 = vmatpush1.msra.mxu0 0.0
    %1766 = vmatprep.subr.mxu0 0.0
    %1767 = vmatpush1.msra.mxu0 0.0
    %1768 = vmatprep.subr.mxu0 0.0
    %1769 = vmatpush1.msra.mxu0 0.0
    %1770 = vmatprep.subr.mxu0 0.0
    %1771 = vmatpush1.msra.mxu0 0.0
    %1772 = vmatprep.subr.mxu0 0.0
    %1773 = vmatpush1.msra.mxu0 0.0
    %1774 = vmatprep.subr.mxu0 0.0
    %1775 = vmatpush1.msra.mxu0 0.0
    %1776 = vmatprep.subr.mxu0 0.0
    %1777 = vmatpush1.msra.mxu0 0.0
    %1778 = vmatprep.subr.mxu0 0.0
    %1779 = vmatpush1.msra.mxu0 0.0
    %1780 = vmatprep.subr.mxu0 0.0
    %1781 = vmatpush1.msra.mxu0 0.0
    %1782 = vmatprep.subr.mxu0 0.0
    %1783 = vmatpush1.msra.mxu0 0.0
    %1784 = vmatprep.subr.mxu0 0.0
    %1785 = vmatpush1.msra.mxu0 0.0
    %1786 = vmatprep.subr.mxu0 0.0
    %1787 = vmatpush1.msra.mxu0 0.0
    %1788 = vmatprep.subr.mxu0 0.0
    %1789 = vmatpush1.msra.mxu0 0.0
    %1790 = vmatprep.subr.mxu0 0.0
    %1791 = vmatpush1.msra.mxu0 0.0
    %1792 = vmatprep.subr.mxu0 0.0
    %1793 = vmatpush1.msra.mxu0 0.0
    %1794 = vmatprep.subr.mxu0 0.0
    %1795 = vmatpush1.msra.mxu0 0.0
    %1796 = vmatprep.subr.mxu0 0.0
    %1797 = vmatpush1.msra.mxu0 0.0
    %1798 = vmatprep.subr.mxu0 0.0
    %1799 = vmatpush1.msra.mxu0 0.0
    %1800 = vmatprep.subr.mxu0 0.0
    %1801 = vmatpush1.msra.mxu0 0.0
    %1802 = vmatprep.subr.mxu0 0.0
    %1803 = vmatpush1.msra.mxu0 0.0
    %1804 = vmatprep.subr.mxu0 0.0
    %1805 = vmatpush1.msra.mxu0 0.0
    %1806 = vmatprep.subr.mxu0 0.0
    %1807 = vmatpush1.msra.mxu0 0.0
    %1808 = vmatprep.mubr.f32.mxu0 0.0
    %1809 = vmatmul.mubr.f32.gmra.mrb[0].mxu0 %v1740
    %v1810 = vpop.f32.mrb[0].mxu0
    %v1811 = vadd.f32 %v1708, %v1810
    %v1812 = vpop.f32.mrb[0].mxu0
    %1813 = vmatprep.mubr.f32.mxu0 0.0
    %1814 = vmatmul.mubr.f32.gmra.mrb[0].mxu0 %v1742
    %v1815 = vpop.f32.mrb[0].mxu0
    %v1816 = vadd.f32 %v1708, %v1815
    %v1817 = vpop.f32.mrb[0].mxu0
    %1818 = vdwg.mxu0
    %v1819 = vld [vmem:[%s8] sm:$0xff]
    %v1820 = vld [vmem:[%s8 + $0x8] sm:$0xff]
    %v1821 = vld [vmem:[%s8 + $0x10] sm:$0xff]
    %v1822 = vld [vmem:[%s8 + $0x18] sm:$0xff]
    %v1823 = vld [vmem:[%s10] sm:$0x1]
    %v1824 = vld [vmem:[%s6] sm:$0x3]
    %v1826 = vlaneseq
    %v1827 = vshrl.u32 %v1826, 7
    %v1828 = vsub.s32 0, %v1827
    %v1829 = vrot.slane %v1823, %v1828
    %v1832 = vsel %vm453, %v1824, 0
    %1834 = vmatprep.subr.mxu0 0.0
    %1835 = vmatpush1.msra.mxu0 %v1819
    %1836 = vmatprep.subr.mxu0 0.0
    %1837 = vmatpush1.msra.mxu0 %v1820
    %1838 = vmatprep.subr.mxu0 0.0
    %1839 = vmatpush1.msra.mxu0 %v1821
    %1840 = vmatprep.subr.mxu0 0.0
    %1841 = vmatpush1.msra.mxu0 %v1822
    %1842 = vmatprep.subr.mxu0 0.0
    %1843 = vmatpush1.msra.mxu0 0.0
    %1844 = vmatprep.subr.mxu0 0.0
    %1845 = vmatpush1.msra.mxu0 0.0
    %1846 = vmatprep.subr.mxu0 0.0
    %1847 = vmatpush1.msra.mxu0 0.0
    %1848 = vmatprep.subr.mxu0 0.0
    %1849 = vmatpush1.msra.mxu0 0.0
    %1850 = vmatprep.subr.mxu0 0.0
    %1851 = vmatpush1.msra.mxu0 0.0
    %1852 = vmatprep.subr.mxu0 0.0
    %1853 = vmatpush1.msra.mxu0 0.0
    %1854 = vmatprep.subr.mxu0 0.0
    %1855 = vmatpush1.msra.mxu0 0.0
    %1856 = vmatprep.subr.mxu0 0.0
    %1857 = vmatpush1.msra.mxu0 0.0
    %1858 = vmatprep.subr.mxu0 0.0
    %1859 = vmatpush1.msra.mxu0 0.0
    %1860 = vmatprep.subr.mxu0 0.0
    %1861 = vmatpush1.msra.mxu0 0.0
    %1862 = vmatprep.subr.mxu0 0.0
    %1863 = vmatpush1.msra.mxu0 0.0
    %1864 = vmatprep.subr.mxu0 0.0
    %1865 = vmatpush1.msra.mxu0 0.0
    %1866 = vmatprep.subr.mxu0 0.0
    %1867 = vmatpush1.msra.mxu0 0.0
    %1868 = vmatprep.subr.mxu0 0.0
    %1869 = vmatpush1.msra.mxu0 0.0
    %1870 = vmatprep.subr.mxu0 0.0
    %1871 = vmatpush1.msra.mxu0 0.0
    %1872 = vmatprep.subr.mxu0 0.0
    %1873 = vmatpush1.msra.mxu0 0.0
    %1874 = vmatprep.subr.mxu0 0.0
    %1875 = vmatpush1.msra.mxu0 0.0
    %1876 = vmatprep.subr.mxu0 0.0
    %1877 = vmatpush1.msra.mxu0 0.0
    %1878 = vmatprep.subr.mxu0 0.0
    %1879 = vmatpush1.msra.mxu0 0.0
    %1880 = vmatprep.subr.mxu0 0.0
    %1881 = vmatpush1.msra.mxu0 0.0
    %1882 = vmatprep.subr.mxu0 0.0
    %1883 = vmatpush1.msra.mxu0 0.0
    %1884 = vmatprep.subr.mxu0 0.0
    %1885 = vmatpush1.msra.mxu0 0.0
    %1886 = vmatprep.subr.mxu0 0.0
    %1887 = vmatpush1.msra.mxu0 0.0
    %1888 = vmatprep.subr.mxu0 0.0
    %1889 = vmatpush1.msra.mxu0 0.0
    %1890 = vmatprep.subr.mxu0 0.0
    %1891 = vmatpush1.msra.mxu0 0.0
    %1892 = vmatprep.subr.mxu0 0.0
    %1893 = vmatpush1.msra.mxu0 0.0
    %1894 = vmatprep.subr.mxu0 0.0
    %1895 = vmatpush1.msra.mxu0 0.0
    %1896 = vmatprep.subr.mxu0 0.0
    %1897 = vmatpush1.msra.mxu0 0.0
    %1898 = vmatprep.mubr.f32.mxu0 0.0
    %1899 = vmatmul.mubr.f32.gmra.mrb[0].mxu0 %v1832
    %v1900 = vpop.f32.mrb[0].mxu0
    %v1901 = vadd.f32 %v1829, %v1900
    %v1902 = vpop.f32.mrb[0].mxu0
    %1903 = vdwg.mxu0
    %v1904 = vadd.f32 %v1811, %v1901
    %v1905 = vxor.u32 %v1904, 2147483648
    %v1906 = vmul.f32 %v1905, 1.442695
    %v1907 = vpow.pop %v1906
    %v1908 = vadd.f32 %v1907, 1.0
    %v1909 = vrcp.pop %v1908
    %v1910 = vmul.f32 1.0, %v1909
    %1912 = vrot.lane.b32.xlu0 %v1901, 64
    %v1913 = vpop.permute.xlu0 %1912
    %v1915 = vmul.f32 %v1910, %v1913
    %1917 = vrot.lane.b32.xlu0 %v1915, 64
    %v1918 = vpop.permute.xlu0 %1917
    %v1920 = vadd.f32 %v1811, %v1918
    %v1921 = vtanh.pop %v1920
    %v1922 = vsub.f32 1.0, %v1910
    %1924 = vrot.lane.b32.xlu0 %v1921, 96
    %v1925 = vpop.permute.xlu0 %1924
    %v1927 = vmul.f32 %v1922, %v1925
    %1928 = vrot.lane.b32.xlu0 %v1824, 32
    %v1929 = vpop.permute.xlu0 %1928
    %v1931 = vmul.f32 %v1910, %v1929
    %v1932 = vadd.f32 %v1927, %v1931
    %1934 = vrot.lane.b32.xlu0 %v1932, 96
    %v1935 = vpop.permute.xlu0 %1934
    %v1936 = vsel %vm453, %v1935, 0
    %1938 = vmatprep.subr.mxu0 0.0
    %1939 = vmatpush1.msra.mxu0 %v1819
    %1940 = vmatprep.subr.mxu0 0.0
    %1941 = vmatpush1.msra.mxu0 %v1820
    %1942 = vmatprep.subr.mxu0 0.0
    %1943 = vmatpush1.msra.mxu0 %v1821
    %1944 = vmatprep.subr.mxu0 0.0
    %1945 = vmatpush1.msra.mxu0 %v1822
    %1946 = vmatprep.subr.mxu0 0.0
    %1947 = vmatpush1.msra.mxu0 0.0
    %1948 = vmatprep.subr.mxu0 0.0
    %1949 = vmatpush1.msra.mxu0 0.0
    %1950 = vmatprep.subr.mxu0 0.0
    %1951 = vmatpush1.msra.mxu0 0.0
    %1952 = vmatprep.subr.mxu0 0.0
    %1953 = vmatpush1.msra.mxu0 0.0
    %1954 = vmatprep.subr.mxu0 0.0
    %1955 = vmatpush1.msra.mxu0 0.0
    %1956 = vmatprep.subr.mxu0 0.0
    %1957 = vmatpush1.msra.mxu0 0.0
    %1958 = vmatprep.subr.mxu0 0.0
    %1959 = vmatpush1.msra.mxu0 0.0
    %1960 = vmatprep.subr.mxu0 0.0
    %1961 = vmatpush1.msra.mxu0 0.0
    %1962 = vmatprep.subr.mxu0 0.0
    %1963 = vmatpush1.msra.mxu0 0.0
    %1964 = vmatprep.subr.mxu0 0.0
    %1965 = vmatpush1.msra.mxu0 0.0
    %1966 = vmatprep.subr.mxu0 0.0
    %1967 = vmatpush1.msra.mxu0 0.0
    %1968 = vmatprep.subr.mxu0 0.0
    %1969 = vmatpush1.msra.mxu0 0.0
    %1970 = vmatprep.subr.mxu0 0.0
    %1971 = vmatpush1.msra.mxu0 0.0
    %1972 = vmatprep.subr.mxu0 0.0
    %1973 = vmatpush1.msra.mxu0 0.0
    %1974 = vmatprep.subr.mxu0 0.0
    %1975 = vmatpush1.msra.mxu0 0.0
    %1976 = vmatprep.subr.mxu0 0.0
    %1977 = vmatpush1.msra.mxu0 0.0
    %1978 = vmatprep.subr.mxu0 0.0
    %1979 = vmatpush1.msra.mxu0 0.0
    %1980 = vmatprep.subr.mxu0 0.0
    %1981 = vmatpush1.msra.mxu0 0.0
    %1982 = vmatprep.subr.mxu0 0.0
    %1983 = vmatpush1.msra.mxu0 0.0
    %1984 = vmatprep.subr.mxu0 0.0
    %1985 = vmatpush1.msra.mxu0 0.0
    %1986 = vmatprep.subr.mxu0 0.0
    %1987 = vmatpush1.msra.mxu0 0.0
    %1988 = vmatprep.subr.mxu0 0.0
    %1989 = vmatpush1.msra.mxu0 0.0
    %1990 = vmatprep.subr.mxu0 0.0
    %1991 = vmatpush1.msra.mxu0 0.0
    %1992 = vmatprep.subr.mxu0 0.0
    %1993 = vmatpush1.msra.mxu0 0.0
    %1994 = vmatprep.subr.mxu0 0.0
    %1995 = vmatpush1.msra.mxu0 0.0
    %1996 = vmatprep.subr.mxu0 0.0
    %1997 = vmatpush1.msra.mxu0 0.0
    %1998 = vmatprep.subr.mxu0 0.0
    %1999 = vmatpush1.msra.mxu0 0.0
    %2000 = vmatprep.subr.mxu0 0.0
    %2001 = vmatpush1.msra.mxu0 0.0
    %2002 = vmatprep.mubr.f32.mxu0 0.0
    %2003 = vmatmul.mubr.f32.gmra.mrb[0].mxu0 %v1936
    %v2004 = vpop.f32.mrb[0].mxu0
    %v2005 = vadd.f32 %v1829, %v2004
    %v2006 = vpop.f32.mrb[0].mxu0
    %2007 = vdwg.mxu0
    %v2009 = vrot.slane %v2005, 6
    %v2011 = vadd.f32 %v1811, %v2009
    %v2012 = vxor.u32 %v2011, 2147483648
    %v2013 = vmul.f32 %v2012, 1.442695
    %v2014 = vpow.pop %v2013
    %v2015 = vadd.f32 %v2014, 1.0
    %v2016 = vrcp.pop %v2015
    %v2017 = vmul.f32 1.0, %v2016
    %2018 = vrot.lane.b32.xlu0 %v2009, 64
    %v2019 = vpop.permute.xlu0 %2018
    %v2021 = vmul.f32 %v2017, %v2019
    %2023 = vrot.lane.b32.xlu0 %v2021, 64
    %v2024 = vpop.permute.xlu0 %2023
    %v2026 = vadd.f32 %v1811, %v2024
    %v2027 = vtanh.pop %v2026
    %v2028 = vsub.f32 1.0, %v2017
    %2030 = vrot.lane.b32.xlu0 %v2027, 96
    %v2031 = vpop.permute.xlu0 %2030
    %v2033 = vmul.f32 %v2028, %v2031
    %v2034 = vrot.slane %v1932, 6
    %v2036 = vmul.f32 %v2017, %v2034
    %v2037 = vadd.f32 %v2033, %v2036
    %v2039 = vrot.slane %v2037, 2
    %2040 = vrot.lane.b32.xlu0 %v2039, 96
    %v2041 = vpop.permute.xlu0 %2040
    %v2042 = vsel %vm453, %v2041, 0
    %2044 = vmatprep.subr.mxu0 0.0
    %2045 = vmatpush1.msra.mxu0 %v1819
    %2046 = vmatprep.subr.mxu0 0.0
    %2047 = vmatpush1.msra.mxu0 %v1820
    %2048 = vmatprep.subr.mxu0 0.0
    %2049 = vmatpush1.msra.mxu0 %v1821
    %2050 = vmatprep.subr.mxu0 0.0
    %2051 = vmatpush1.msra.mxu0 %v1822
    %2052 = vmatprep.subr.mxu0 0.0
    %2053 = vmatpush1.msra.mxu0 0.0
    %2054 = vmatprep.subr.mxu0 0.0
    %2055 = vmatpush1.msra.mxu0 0.0
    %2056 = vmatprep.subr.mxu0 0.0
    %2057 = vmatpush1.msra.mxu0 0.0
    %2058 = vmatprep.subr.mxu0 0.0
    %2059 = vmatpush1.msra.mxu0 0.0
    %2060 = vmatprep.subr.mxu0 0.0
    %2061 = vmatpush1.msra.mxu0 0.0
    %2062 = vmatprep.subr.mxu0 0.0
    %2063 = vmatpush1.msra.mxu0 0.0
    %2064 = vmatprep.subr.mxu0 0.0
    %2065 = vmatpush1.msra.mxu0 0.0
    %2066 = vmatprep.subr.mxu0 0.0
    %2067 = vmatpush1.msra.mxu0 0.0
    %2068 = vmatprep.subr.mxu0 0.0
    %2069 = vmatpush1.msra.mxu0 0.0
    %2070 = vmatprep.subr.mxu0 0.0
    %2071 = vmatpush1.msra.mxu0 0.0
    %2072 = vmatprep.subr.mxu0 0.0
    %2073 = vmatpush1.msra.mxu0 0.0
    %2074 = vmatprep.subr.mxu0 0.0
    %2075 = vmatpush1.msra.mxu0 0.0
    %2076 = vmatprep.subr.mxu0 0.0
    %2077 = vmatpush1.msra.mxu0 0.0
    %2078 = vmatprep.subr.mxu0 0.0
    %2079 = vmatpush1.msra.mxu0 0.0
    %2080 = vmatprep.subr.mxu0 0.0
    %2081 = vmatpush1.msra.mxu0 0.0
    %2082 = vmatprep.subr.mxu0 0.0
    %2083 = vmatpush1.msra.mxu0 0.0
    %2084 = vmatprep.subr.mxu0 0.0
    %2085 = vmatpush1.msra.mxu0 0.0
    %2086 = vmatprep.subr.mxu0 0.0
    %2087 = vmatpush1.msra.mxu0 0.0
    %2088 = vmatprep.subr.mxu0 0.0
    %2089 = vmatpush1.msra.mxu0 0.0
    %2090 = vmatprep.subr.mxu0 0.0
    %2091 = vmatpush1.msra.mxu0 0.0
    %2092 = vmatprep.subr.mxu0 0.0
    %2093 = vmatpush1.msra.mxu0 0.0
    %2094 = vmatprep.subr.mxu0 0.0
    %2095 = vmatpush1.msra.mxu0 0.0
    %2096 = vmatprep.subr.mxu0 0.0
    %2097 = vmatpush1.msra.mxu0 0.0
    %2098 = vmatprep.subr.mxu0 0.0
    %2099 = vmatpush1.msra.mxu0 0.0
    %2100 = vmatprep.subr.mxu0 0.0
    %2101 = vmatpush1.msra.mxu0 0.0
    %2102 = vmatprep.subr.mxu0 0.0
    %2103 = vmatpush1.msra.mxu0 0.0
    %2104 = vmatprep.subr.mxu0 0.0
    %2105 = vmatpush1.msra.mxu0 0.0
    %2106 = vmatprep.subr.mxu0 0.0
    %2107 = vmatpush1.msra.mxu0 0.0
    %2108 = vmatprep.mubr.f32.mxu0 0.0
    %2109 = vmatmul.mubr.f32.gmra.mrb[0].mxu0 %v2042
    %v2110 = vpop.f32.mrb[0].mxu0
    %v2111 = vadd.f32 %v1829, %v2110
    %v2112 = vpop.f32.mrb[0].mxu0
    %2113 = vdwg.mxu0
    %v2115 = vrot.slane %v2111, 4
    %v2117 = vadd.f32 %v1811, %v2115
    %v2118 = vxor.u32 %v2117, 2147483648
    %v2119 = vmul.f32 %v2118, 1.442695
    %v2120 = vpow.pop %v2119
    %v2121 = vadd.f32 %v2120, 1.0
    %v2122 = vrcp.pop %v2121
    %v2123 = vmul.f32 1.0, %v2122
    %2124 = vrot.lane.b32.xlu0 %v2115, 64
    %v2125 = vpop.permute.xlu0 %2124
    %v2127 = vmul.f32 %v2123, %v2125
    %2129 = vrot.lane.b32.xlu0 %v2127, 64
    %v2130 = vpop.permute.xlu0 %2129
    %v2132 = vadd.f32 %v1811, %v2130
    %v2133 = vtanh.pop %v2132
    %v2134 = vsub.f32 1.0, %v2123
    %2136 = vrot.lane.b32.xlu0 %v2133, 96
    %v2137 = vpop.permute.xlu0 %2136
    %v2139 = vmul.f32 %v2134, %v2137
    %v2140 = vrot.slane %v2037, 6
    %v2142 = vmul.f32 %v2123, %v2140
    %v2143 = vadd.f32 %v2139, %v2142
    %v2145 = vrot.slane %v2143, 4
    %2146 = vrot.lane.b32.xlu0 %v2145, 96
    %v2147 = vpop.permute.xlu0 %2146
    %v2148 = vsel %vm453, %v2147, 0
    %2150 = vmatprep.subr.mxu0 0.0
    %2151 = vmatpush1.msra.mxu0 %v1819
    %2152 = vmatprep.subr.mxu0 0.0
    %2153 = vmatpush1.msra.mxu0 %v1820
    %2154 = vmatprep.subr.mxu0 0.0
    %2155 = vmatpush1.msra.mxu0 %v1821
    %2156 = vmatprep.subr.mxu0 0.0
    %2157 = vmatpush1.msra.mxu0 %v1822
    %2158 = vmatprep.subr.mxu0 0.0
    %2159 = vmatpush1.msra.mxu0 0.0
    %2160 = vmatprep.subr.mxu0 0.0
    %2161 = vmatpush1.msra.mxu0 0.0
    %2162 = vmatprep.subr.mxu0 0.0
    %2163 = vmatpush1.msra.mxu0 0.0
    %2164 = vmatprep.subr.mxu0 0.0
    %2165 = vmatpush1.msra.mxu0 0.0
    %2166 = vmatprep.subr.mxu0 0.0
    %2167 = vmatpush1.msra.mxu0 0.0
    %2168 = vmatprep.subr.mxu0 0.0
    %2169 = vmatpush1.msra.mxu0 0.0
    %2170 = vmatprep.subr.mxu0 0.0
    %2171 = vmatpush1.msra.mxu0 0.0
    %2172 = vmatprep.subr.mxu0 0.0
    %2173 = vmatpush1.msra.mxu0 0.0
    %2174 = vmatprep.subr.mxu0 0.0
    %2175 = vmatpush1.msra.mxu0 0.0
    %2176 = vmatprep.subr.mxu0 0.0
    %2177 = vmatpush1.msra.mxu0 0.0
    %2178 = vmatprep.subr.mxu0 0.0
    %2179 = vmatpush1.msra.mxu0 0.0
    %2180 = vmatprep.subr.mxu0 0.0
    %2181 = vmatpush1.msra.mxu0 0.0
    %2182 = vmatprep.subr.mxu0 0.0
    %2183 = vmatpush1.msra.mxu0 0.0
    %2184 = vmatprep.subr.mxu0 0.0
    %2185 = vmatpush1.msra.mxu0 0.0
    %2186 = vmatprep.subr.mxu0 0.0
    %2187 = vmatpush1.msra.mxu0 0.0
    %2188 = vmatprep.subr.mxu0 0.0
    %2189 = vmatpush1.msra.mxu0 0.0
    %2190 = vmatprep.subr.mxu0 0.0
    %2191 = vmatpush1.msra.mxu0 0.0
    %2192 = vmatprep.subr.mxu0 0.0
    %2193 = vmatpush1.msra.mxu0 0.0
    %2194 = vmatprep.subr.mxu0 0.0
    %2195 = vmatpush1.msra.mxu0 0.0
    %2196 = vmatprep.subr.mxu0 0.0
    %2197 = vmatpush1.msra.mxu0 0.0
    %2198 = vmatprep.subr.mxu0 0.0
    %2199 = vmatpush1.msra.mxu0 0.0
    %2200 = vmatprep.subr.mxu0 0.0
    %2201 = vmatpush1.msra.mxu0 0.0
    %2202 = vmatprep.subr.mxu0 0.0
    %2203 = vmatpush1.msra.mxu0 0.0
    %2204 = vmatprep.subr.mxu0 0.0
    %2205 = vmatpush1.msra.mxu0 0.0
    %2206 = vmatprep.subr.mxu0 0.0
    %2207 = vmatpush1.msra.mxu0 0.0
    %2208 = vmatprep.subr.mxu0 0.0
    %2209 = vmatpush1.msra.mxu0 0.0
    %2210 = vmatprep.subr.mxu0 0.0
    %2211 = vmatpush1.msra.mxu0 0.0
    %2212 = vmatprep.subr.mxu0 0.0
    %2213 = vmatpush1.msra.mxu0 0.0
    %2214 = vmatprep.mubr.f32.mxu0 0.0
    %2215 = vmatmul.mubr.f32.gmra.mrb[0].mxu0 %v2148
    %v2216 = vpop.f32.mrb[0].mxu0
    %v2217 = vadd.f32 %v1829, %v2216
    %v2218 = vpop.f32.mrb[0].mxu0
    %2219 = vdwg.mxu0
    %v2221 = vrot.slane %v2217, 2
    %v2223 = vadd.f32 %v1811, %v2221
    %v2224 = vxor.u32 %v2223, 2147483648
    %v2225 = vmul.f32 %v2224, 1.442695
    %v2226 = vpow.pop %v2225
    %v2227 = vadd.f32 %v2226, 1.0
    %v2228 = vrcp.pop %v2227
    %v2229 = vmul.f32 1.0, %v2228
    %2230 = vrot.lane.b32.xlu0 %v2221, 64
    %v2231 = vpop.permute.xlu0 %2230
    %v2233 = vmul.f32 %v2229, %v2231
    %2235 = vrot.lane.b32.xlu0 %v2233, 64
    %v2236 = vpop.permute.xlu0 %2235
    %v2238 = vadd.f32 %v1811, %v2236
    %v2239 = vtanh.pop %v2238
    %v2240 = vsub.f32 1.0, %v2229
    %2242 = vrot.lane.b32.xlu0 %v2239, 96
    %v2243 = vpop.permute.xlu0 %2242
    %v2245 = vmul.f32 %v2240, %v2243
    %v2246 = vrot.slane %v2143, 6
    %v2248 = vmul.f32 %v2229, %v2246
    %v2249 = vadd.f32 %v2245, %v2248
    %v2251 = vrot.slane %v2249, 6
    %2252 = vrot.lane.b32.xlu0 %v2251, 96
    %v2253 = vpop.permute.xlu0 %2252
    %v2254 = vsel %vm453, %v2253, 0
    %2256 = vmatprep.subr.mxu0 0.0
    %2257 = vmatpush1.msra.mxu0 %v1819
    %2258 = vmatprep.subr.mxu0 0.0
    %2259 = vmatpush1.msra.mxu0 %v1820
    %2260 = vmatprep.subr.mxu0 0.0
    %2261 = vmatpush1.msra.mxu0 %v1821
    %2262 = vmatprep.subr.mxu0 0.0
    %2263 = vmatpush1.msra.mxu0 %v1822
    %2264 = vmatprep.subr.mxu0 0.0
    %2265 = vmatpush1.msra.mxu0 0.0
    %2266 = vmatprep.subr.mxu0 0.0
    %2267 = vmatpush1.msra.mxu0 0.0
    %2268 = vmatprep.subr.mxu0 0.0
    %2269 = vmatpush1.msra.mxu0 0.0
    %2270 = vmatprep.subr.mxu0 0.0
    %2271 = vmatpush1.msra.mxu0 0.0
    %2272 = vmatprep.subr.mxu0 0.0
    %2273 = vmatpush1.msra.mxu0 0.0
    %2274 = vmatprep.subr.mxu0 0.0
    %2275 = vmatpush1.msra.mxu0 0.0
    %2276 = vmatprep.subr.mxu0 0.0
    %2277 = vmatpush1.msra.mxu0 0.0
    %2278 = vmatprep.subr.mxu0 0.0
    %2279 = vmatpush1.msra.mxu0 0.0
    %2280 = vmatprep.subr.mxu0 0.0
    %2281 = vmatpush1.msra.mxu0 0.0
    %2282 = vmatprep.subr.mxu0 0.0
    %2283 = vmatpush1.msra.mxu0 0.0
    %2284 = vmatprep.subr.mxu0 0.0
    %2285 = vmatpush1.msra.mxu0 0.0
    %2286 = vmatprep.subr.mxu0 0.0
    %2287 = vmatpush1.msra.mxu0 0.0
    %2288 = vmatprep.subr.mxu0 0.0
    %2289 = vmatpush1.msra.mxu0 0.0
    %2290 = vmatprep.subr.mxu0 0.0
    %2291 = vmatpush1.msra.mxu0 0.0
    %2292 = vmatprep.subr.mxu0 0.0
    %2293 = vmatpush1.msra.mxu0 0.0
    %2294 = vmatprep.subr.mxu0 0.0
    %2295 = vmatpush1.msra.mxu0 0.0
    %2296 = vmatprep.subr.mxu0 0.0
    %2297 = vmatpush1.msra.mxu0 0.0
    %2298 = vmatprep.subr.mxu0 0.0
    %2299 = vmatpush1.msra.mxu0 0.0
    %2300 = vmatprep.subr.mxu0 0.0
    %2301 = vmatpush1.msra.mxu0 0.0
    %2302 = vmatprep.subr.mxu0 0.0
    %2303 = vmatpush1.msra.mxu0 0.0
    %2304 = vmatprep.subr.mxu0 0.0
    %2305 = vmatpush1.msra.mxu0 0.0
    %2306 = vmatprep.subr.mxu0 0.0
    %2307 = vmatpush1.msra.mxu0 0.0
    %2308 = vmatprep.subr.mxu0 0.0
    %2309 = vmatpush1.msra.mxu0 0.0
    %2310 = vmatprep.subr.mxu0 0.0
    %2311 = vmatpush1.msra.mxu0 0.0
    %2312 = vmatprep.subr.mxu0 0.0
    %2313 = vmatpush1.msra.mxu0 0.0
    %2314 = vmatprep.subr.mxu0 0.0
    %2315 = vmatpush1.msra.mxu0 0.0
    %2316 = vmatprep.subr.mxu0 0.0
    %2317 = vmatpush1.msra.mxu0 0.0
    %2318 = vmatprep.subr.mxu0 0.0
    %2319 = vmatpush1.msra.mxu0 0.0
    %2320 = vmatprep.mubr.f32.mxu0 0.0
    %2321 = vmatmul.mubr.f32.gmra.mrb[0].mxu0 %v2254
    %v2322 = vpop.f32.mrb[0].mxu0
    %v2323 = vadd.f32 %v1829, %v2322
    %v2324 = vpop.f32.mrb[0].mxu0
    %2325 = vdwg.mxu0
    %v2326 = vadd.f32 %v1816, %v2323
    %v2327 = vxor.u32 %v2326, 2147483648
    %v2328 = vmul.f32 %v2327, 1.442695
    %v2329 = vpow.pop %v2328
    %v2330 = vadd.f32 %v2329, 1.0
    %v2331 = vrcp.pop %v2330
    %v2332 = vmul.f32 1.0, %v2331
    %2334 = vrot.lane.b32.xlu0 %v2323, 64
    %v2335 = vpop.permute.xlu0 %2334
    %v2337 = vmul.f32 %v2332, %v2335
    %2339 = vrot.lane.b32.xlu0 %v2337, 64
    %v2340 = vpop.permute.xlu0 %2339
    %v2342 = vadd.f32 %v1816, %v2340
    %v2343 = vtanh.pop %v2342
    %v2344 = vsub.f32 1.0, %v2332
    %2346 = vrot.lane.b32.xlu0 %v2343, 96
    %v2347 = vpop.permute.xlu0 %2346
    %v2349 = vmul.f32 %v2344, %v2347
    %v2351 = vmul.f32 %v2332, %v2251
    %v2352 = vadd.f32 %v2349, %v2351
    %2354 = vrot.lane.b32.xlu0 %v2352, 96
    %v2355 = vpop.permute.xlu0 %2354
    %v2356 = vsel %vm453, %v2355, 0
    %2358 = vmatprep.subr.mxu0 0.0
    %2359 = vmatpush1.msra.mxu0 %v1819
    %2360 = vmatprep.subr.mxu0 0.0
    %2361 = vmatpush1.msra.mxu0 %v1820
    %2362 = vmatprep.subr.mxu0 0.0
    %2363 = vmatpush1.msra.mxu0 %v1821
    %2364 = vmatprep.subr.mxu0 0.0
    %2365 = vmatpush1.msra.mxu0 %v1822
    %2366 = vmatprep.subr.mxu0 0.0
    %2367 = vmatpush1.msra.mxu0 0.0
    %2368 = vmatprep.subr.mxu0 0.0
    %2369 = vmatpush1.msra.mxu0 0.0
    %2370 = vmatprep.subr.mxu0 0.0
    %2371 = vmatpush1.msra.mxu0 0.0
    %2372 = vmatprep.subr.mxu0 0.0
    %2373 = vmatpush1.msra.mxu0 0.0
    %2374 = vmatprep.subr.mxu0 0.0
    %2375 = vmatpush1.msra.mxu0 0.0
    %2376 = vmatprep.subr.mxu0 0.0
    %2377 = vmatpush1.msra.mxu0 0.0
    %2378 = vmatprep.subr.mxu0 0.0
    %2379 = vmatpush1.msra.mxu0 0.0
    %2380 = vmatprep.subr.mxu0 0.0
    %2381 = vmatpush1.msra.mxu0 0.0
    %2382 = vmatprep.subr.mxu0 0.0
    %2383 = vmatpush1.msra.mxu0 0.0
    %2384 = vmatprep.subr.mxu0 0.0
    %2385 = vmatpush1.msra.mxu0 0.0
    %2386 = vmatprep.subr.mxu0 0.0
    %2387 = vmatpush1.msra.mxu0 0.0
    %2388 = vmatprep.subr.mxu0 0.0
    %2389 = vmatpush1.msra.mxu0 0.0
    %2390 = vmatprep.subr.mxu0 0.0
    %2391 = vmatpush1.msra.mxu0 0.0
    %2392 = vmatprep.subr.mxu0 0.0
    %2393 = vmatpush1.msra.mxu0 0.0
    %2394 = vmatprep.subr.mxu0 0.0
    %2395 = vmatpush1.msra.mxu0 0.0
    %2396 = vmatprep.subr.mxu0 0.0
    %2397 = vmatpush1.msra.mxu0 0.0
    %2398 = vmatprep.subr.mxu0 0.0
    %2399 = vmatpush1.msra.mxu0 0.0
    %2400 = vmatprep.subr.mxu0 0.0
    %2401 = vmatpush1.msra.mxu0 0.0
    %2402 = vmatprep.subr.mxu0 0.0
    %2403 = vmatpush1.msra.mxu0 0.0
    %2404 = vmatprep.subr.mxu0 0.0
    %2405 = vmatpush1.msra.mxu0 0.0
    %2406 = vmatprep.subr.mxu0 0.0
    %2407 = vmatpush1.msra.mxu0 0.0
    %2408 = vmatprep.subr.mxu0 0.0
    %2409 = vmatpush1.msra.mxu0 0.0
    %2410 = vmatprep.subr.mxu0 0.0
    %2411 = vmatpush1.msra.mxu0 0.0
    %2412 = vmatprep.subr.mxu0 0.0
    %2413 = vmatpush1.msra.mxu0 0.0
    %2414 = vmatprep.subr.mxu0 0.0
    %2415 = vmatpush1.msra.mxu0 0.0
    %2416 = vmatprep.subr.mxu0 0.0
    %2417 = vmatpush1.msra.mxu0 0.0
    %2418 = vmatprep.subr.mxu0 0.0
    %2419 = vmatpush1.msra.mxu0 0.0
    %2420 = vmatprep.subr.mxu0 0.0
    %2421 = vmatpush1.msra.mxu0 0.0
    %2422 = vmatprep.mubr.f32.mxu0 0.0
    %2423 = vmatmul.mubr.f32.gmra.mrb[0].mxu0 %v2356
    %v2424 = vpop.f32.mrb[0].mxu0
    %v2425 = vadd.f32 %v1829, %v2424
    %v2426 = vpop.f32.mrb[0].mxu0
    %2427 = vdwg.mxu0
    %v2429 = vrot.slane %v2425, 6
    %v2431 = vadd.f32 %v1816, %v2429
    %v2432 = vxor.u32 %v2431, 2147483648
    %v2433 = vmul.f32 %v2432, 1.442695
    %v2434 = vpow.pop %v2433
    %v2435 = vadd.f32 %v2434, 1.0
    %v2436 = vrcp.pop %v2435
    %v2437 = vmul.f32 1.0, %v2436
    %2438 = vrot.lane.b32.xlu0 %v2429, 64
    %v2439 = vpop.permute.xlu0 %2438
    %v2441 = vmul.f32 %v2437, %v2439
    %2443 = vrot.lane.b32.xlu0 %v2441, 64
    %v2444 = vpop.permute.xlu0 %2443
    %v2446 = vadd.f32 %v1816, %v2444
    %v2447 = vtanh.pop %v2446
    %v2448 = vsub.f32 1.0, %v2437
    %2450 = vrot.lane.b32.xlu0 %v2447, 96
    %v2451 = vpop.permute.xlu0 %2450
    %v2453 = vmul.f32 %v2448, %v2451
    %v2454 = vrot.slane %v2352, 6
    %v2456 = vmul.f32 %v2437, %v2454
    %v2457 = vadd.f32 %v2453, %v2456
    %v2459 = vrot.slane %v2457, 2
    %2460 = vrot.lane.b32.xlu0 %v2459, 96
    %v2461 = vpop.permute.xlu0 %2460
    %v2462 = vsel %vm453, %v2461, 0
    %2464 = vmatprep.subr.mxu0 0.0
    %2465 = vmatpush1.msra.mxu0 %v1819
    %2466 = vmatprep.subr.mxu0 0.0
    %2467 = vmatpush1.msra.mxu0 %v1820
    %2468 = vmatprep.subr.mxu0 0.0
    %2469 = vmatpush1.msra.mxu0 %v1821
    %2470 = vmatprep.subr.mxu0 0.0
    %2471 = vmatpush1.msra.mxu0 %v1822
    %2472 = vmatprep.subr.mxu0 0.0
    %2473 = vmatpush1.msra.mxu0 0.0
    %2474 = vmatprep.subr.mxu0 0.0
    %2475 = vmatpush1.msra.mxu0 0.0
    %2476 = vmatprep.subr.mxu0 0.0
    %2477 = vmatpush1.msra.mxu0 0.0
    %2478 = vmatprep.subr.mxu0 0.0
    %2479 = vmatpush1.msra.mxu0 0.0
    %2480 = vmatprep.subr.mxu0 0.0
    %2481 = vmatpush1.msra.mxu0 0.0
    %2482 = vmatprep.subr.mxu0 0.0
    %2483 = vmatpush1.msra.mxu0 0.0
    %2484 = vmatprep.subr.mxu0 0.0
    %2485 = vmatpush1.msra.mxu0 0.0
    %2486 = vmatprep.subr.mxu0 0.0
    %2487 = vmatpush1.msra.mxu0 0.0
    %2488 = vmatprep.subr.mxu0 0.0
    %2489 = vmatpush1.msra.mxu0 0.0
    %2490 = vmatprep.subr.mxu0 0.0
    %2491 = vmatpush1.msra.mxu0 0.0
    %2492 = vmatprep.subr.mxu0 0.0
    %2493 = vmatpush1.msra.mxu0 0.0
    %2494 = vmatprep.subr.mxu0 0.0
    %2495 = vmatpush1.msra.mxu0 0.0
    %2496 = vmatprep.subr.mxu0 0.0
    %2497 = vmatpush1.msra.mxu0 0.0
    %2498 = vmatprep.subr.mxu0 0.0
    %2499 = vmatpush1.msra.mxu0 0.0
    %2500 = vmatprep.subr.mxu0 0.0
    %2501 = vmatpush1.msra.mxu0 0.0
    %2502 = vmatprep.subr.mxu0 0.0
    %2503 = vmatpush1.msra.mxu0 0.0
    %2504 = vmatprep.subr.mxu0 0.0
    %2505 = vmatpush1.msra.mxu0 0.0
    %2506 = vmatprep.subr.mxu0 0.0
    %2507 = vmatpush1.msra.mxu0 0.0
    %2508 = vmatprep.subr.mxu0 0.0
    %2509 = vmatpush1.msra.mxu0 0.0
    %2510 = vmatprep.subr.mxu0 0.0
    %2511 = vmatpush1.msra.mxu0 0.0
    %2512 = vmatprep.subr.mxu0 0.0
    %2513 = vmatpush1.msra.mxu0 0.0
    %2514 = vmatprep.subr.mxu0 0.0
    %2515 = vmatpush1.msra.mxu0 0.0
    %2516 = vmatprep.subr.mxu0 0.0
    %2517 = vmatpush1.msra.mxu0 0.0
    %2518 = vmatprep.subr.mxu0 0.0
    %2519 = vmatpush1.msra.mxu0 0.0
    %2520 = vmatprep.subr.mxu0 0.0
    %2521 = vmatpush1.msra.mxu0 0.0
    %2522 = vmatprep.subr.mxu0 0.0
    %2523 = vmatpush1.msra.mxu0 0.0
    %2524 = vmatprep.subr.mxu0 0.0
    %2525 = vmatpush1.msra.mxu0 0.0
    %2526 = vmatprep.subr.mxu0 0.0
    %2527 = vmatpush1.msra.mxu0 0.0
    %2528 = vmatprep.mubr.f32.mxu0 0.0
    %2529 = vmatmul.mubr.f32.gmra.mrb[0].mxu0 %v2462
    %v2530 = vpop.f32.mrb[0].mxu0
    %v2531 = vadd.f32 %v1829, %v2530
    %v2532 = vpop.f32.mrb[0].mxu0
    %2533 = vdwg.mxu0
    %v2535 = vrot.slane %v2531, 4
    %v2537 = vadd.f32 %v1816, %v2535
    %v2538 = vxor.u32 %v2537, 2147483648
    %v2539 = vmul.f32 %v2538, 1.442695
    %v2540 = vpow.pop %v2539
    %v2541 = vadd.f32 %v2540, 1.0
    %v2542 = vrcp.pop %v2541
    %v2543 = vmul.f32 1.0, %v2542
    %2544 = vrot.lane.b32.xlu0 %v2535, 64
    %v2545 = vpop.permute.xlu0 %2544
    %v2547 = vmul.f32 %v2543, %v2545
    %2549 = vrot.lane.b32.xlu0 %v2547, 64
    %v2550 = vpop.permute.xlu0 %2549
    %v2552 = vadd.f32 %v1816, %v2550
    %v2553 = vtanh.pop %v2552
    %v2554 = vsub.f32 1.0, %v2543
    %2556 = vrot.lane.b32.xlu0 %v2553, 96
    %v2557 = vpop.permute.xlu0 %2556
    %v2559 = vmul.f32 %v2554, %v2557
    %v2560 = vrot.slane %v2457, 6
    %v2562 = vmul.f32 %v2543, %v2560
    %v2563 = vadd.f32 %v2559, %v2562
    %v2565 = vrot.slane %v2563, 4
    %2566 = vrot.lane.b32.xlu0 %v2565, 96
    %v2567 = vpop.permute.xlu0 %2566
    %v2568 = vsel %vm453, %v2567, 0
    %2570 = vmatprep.subr.mxu0 0.0
    %2571 = vmatpush1.msra.mxu0 %v1819
    %2572 = vmatprep.subr.mxu0 0.0
    %2573 = vmatpush1.msra.mxu0 %v1820
    %2574 = vmatprep.subr.mxu0 0.0
    %2575 = vmatpush1.msra.mxu0 %v1821
    %2576 = vmatprep.subr.mxu0 0.0
    %2577 = vmatpush1.msra.mxu0 %v1822
    %2578 = vmatprep.subr.mxu0 0.0
    %2579 = vmatpush1.msra.mxu0 0.0
    %2580 = vmatprep.subr.mxu0 0.0
    %2581 = vmatpush1.msra.mxu0 0.0
    %2582 = vmatprep.subr.mxu0 0.0
    %2583 = vmatpush1.msra.mxu0 0.0
    %2584 = vmatprep.subr.mxu0 0.0
    %2585 = vmatpush1.msra.mxu0 0.0
    %2586 = vmatprep.subr.mxu0 0.0
    %2587 = vmatpush1.msra.mxu0 0.0
    %2588 = vmatprep.subr.mxu0 0.0
    %2589 = vmatpush1.msra.mxu0 0.0
    %2590 = vmatprep.subr.mxu0 0.0
    %2591 = vmatpush1.msra.mxu0 0.0
    %2592 = vmatprep.subr.mxu0 0.0
    %2593 = vmatpush1.msra.mxu0 0.0
    %2594 = vmatprep.subr.mxu0 0.0
    %2595 = vmatpush1.msra.mxu0 0.0
    %2596 = vmatprep.subr.mxu0 0.0
    %2597 = vmatpush1.msra.mxu0 0.0
    %2598 = vmatprep.subr.mxu0 0.0
    %2599 = vmatpush1.msra.mxu0 0.0
    %2600 = vmatprep.subr.mxu0 0.0
    %2601 = vmatpush1.msra.mxu0 0.0
    %2602 = vmatprep.subr.mxu0 0.0
    %2603 = vmatpush1.msra.mxu0 0.0
    %2604 = vmatprep.subr.mxu0 0.0
    %2605 = vmatpush1.msra.mxu0 0.0
    %2606 = vmatprep.subr.mxu0 0.0
    %2607 = vmatpush1.msra.mxu0 0.0
    %2608 = vmatprep.subr.mxu0 0.0
    %2609 = vmatpush1.msra.mxu0 0.0
    %2610 = vmatprep.subr.mxu0 0.0
    %2611 = vmatpush1.msra.mxu0 0.0
    %2612 = vmatprep.subr.mxu0 0.0
    %2613 = vmatpush1.msra.mxu0 0.0
    %2614 = vmatprep.subr.mxu0 0.0
    %2615 = vmatpush1.msra.mxu0 0.0
    %2616 = vmatprep.subr.mxu0 0.0
    %2617 = vmatpush1.msra.mxu0 0.0
    %2618 = vmatprep.subr.mxu0 0.0
    %2619 = vmatpush1.msra.mxu0 0.0
    %2620 = vmatprep.subr.mxu0 0.0
    %2621 = vmatpush1.msra.mxu0 0.0
    %2622 = vmatprep.subr.mxu0 0.0
    %2623 = vmatpush1.msra.mxu0 0.0
    %2624 = vmatprep.subr.mxu0 0.0
    %2625 = vmatpush1.msra.mxu0 0.0
    %2626 = vmatprep.subr.mxu0 0.0
    %2627 = vmatpush1.msra.mxu0 0.0
    %2628 = vmatprep.subr.mxu0 0.0
    %2629 = vmatpush1.msra.mxu0 0.0
    %2630 = vmatprep.subr.mxu0 0.0
    %2631 = vmatpush1.msra.mxu0 0.0
    %2632 = vmatprep.subr.mxu0 0.0
    %2633 = vmatpush1.msra.mxu0 0.0
    %2634 = vmatprep.mubr.f32.mxu0 0.0
    %2635 = vmatmul.mubr.f32.gmra.mrb[0].mxu0 %v2568
    %v2636 = vpop.f32.mrb[0].mxu0
    %v2637 = vadd.f32 %v1829, %v2636
    %v2638 = vpop.f32.mrb[0].mxu0
    %2639 = vdwg.mxu0
    %v2641 = vrot.slane %v2637, 2
    %v2643 = vadd.f32 %v1816, %v2641
    %v2644 = vxor.u32 %v2643, 2147483648
    %v2645 = vmul.f32 %v2644, 1.442695
    %v2646 = vpow.pop %v2645
    %v2647 = vadd.f32 %v2646, 1.0
    %v2648 = vrcp.pop %v2647
    %v2649 = vmul.f32 1.0, %v2648
    %2650 = vrot.lane.b32.xlu0 %v2641, 64
    %v2651 = vpop.permute.xlu0 %2650
    %v2653 = vmul.f32 %v2649, %v2651
    %2655 = vrot.lane.b32.xlu0 %v2653, 64
    %v2656 = vpop.permute.xlu0 %2655
    %v2658 = vadd.f32 %v1816, %v2656
    %v2659 = vtanh.pop %v2658
    %v2660 = vsub.f32 1.0, %v2649
    %2662 = vrot.lane.b32.xlu0 %v2659, 96
    %v2663 = vpop.permute.xlu0 %2662
    %v2665 = vmul.f32 %v2660, %v2663
    %v2666 = vrot.slane %v2563, 6
    %v2668 = vmul.f32 %v2649, %v2666
    %v2669 = vadd.f32 %v2665, %v2668
    %2671 = vrot.lane.b32.xlu0 %v2669, 96
    %v2672 = vpop.permute.xlu0 %2671
    %vm2674 = vcmask 261126
    %2675 = vst.msk [vmem:[#allocation3 - $0x6] sm:$0xc0] %vm2674, %v2672
    // Predicated region
    $region46: #{user_encoder_forward.1} parent=1 // pred_check
      _
    $region47: #{user_encoder_forward.1} parent=1 // pred_check_branch
      %2677 = sbr.rel (0) target = $region49
    $region48: #{user_encoder_forward.1} parent=1 // pred_region
      %s2679 = ssub.s32 32, 32
      %2680 = vsyncadd [#allocation4], %s2679
      %s2682 = sshll.u32 [#allocation3], 4
      %s2683 = int_to_ptr.vmem [resolvable:$true] %s2682
      %2685 = dma.vmem_to_hbm [thread:$0]  %s2683, 32, %s11, [#allocation4]
    $region49: #{user_encoder_forward.1} parent=1 // pred_fallthru
      _
    // Predicated region
    $region50: #{user_encoder_forward.1} parent=1 // pred_check
      _
    $region51: #{user_encoder_forward.1} parent=1 // pred_check_branch
      %2687 = sbr.rel (0) target = $region53
    $region52: #{user_encoder_forward.1} parent=1 // pred_region
      %2688 = dma.done [#allocation4], 32
    $region53: #{user_encoder_forward.1} parent=1 // pred_fallthru
      _
    %2689 = vsyncpa [#allocation4], 1

</llo_original>
